<compile_context>
chip_gen: v7x
topology: tpu7x:2x2x1
jax: 0.10.0
libtpu: 0.0.40
codegen_flags: <defaults>
</compile_context>

<pallas_src>
import collections
import functools
import math

import jax
import jax.numpy as jnp
from jax import lax
from jax.experimental import pallas as pl
from jax.experimental.pallas import tpu as pltpu

_LOG_2PI = math.log(2.0 * math.pi)
_DUMMY = -2.0 * math.log(10.0)   # the "- 2.0 * log(10.0)" dummy logit
_EPS = 1e-16                     # scae math.safe_log epsilon
_NEG_BIG = -1e30                 # mask for padded vote lanes

CapsuleLikelihoodTuple = collections.namedtuple(
    "CapsuleLikelihoodTuple",
    "log_prob vote_presence winner winner_pres is_from_capsule "
    "mixing_logits mixing_log_prob soft_winner soft_winner_pres "
    "posterior_mixing_probs",
)


def _capsule_kernel(vp, dummy_ref, xat_ref, w_ref, g_ref,
                    pm_ref, slab_ref, clp_ref):
    """One grid step = one batch element x one tile of TN input points.

    dummy_ref: (B,) SMEM      per-batch dummy-component posterior logit
    xat_ref  : (1, Daug, TN)  [x^T ; ||x||^2 ; 1]  (points on lanes)
    w_ref    : (1, Daug, Vp)  folded Gaussian + mixing weights (padded votes)
    g_ref    : (1, Drows, Vp) gather matrix [votes^T ; pres ; vote index]
    pm_ref   : (1, TN, Vp)    posterior mixing probs over (padded) real votes
    slab_ref : (1, Drows, TN) [winner^T ; winner_pres ; winning idx]
    clp_ref  : (1, TN, 1)     per-point mixture log prob (logsumexp + dummy)
    """
    dummy = dummy_ref[pl.program_id(0)]        # SMEM scalar

    xat = xat_ref[0]                           # (Daug, TN)
    w = w_ref[0]                               # (Daug, Vp)
    g = g_ref[0]                               # (Drows, Vp)

    # Single MXU matmul: post[n, j] = x_n.(v_j/s^2) - 0.5||x_n||^2/s^2 + bias_j
    post = lax.dot_general(xat, w, (((0,), (0,)), ((), ())),
                           preferred_element_type=jnp.float32)   # (TN, Vp)

    # One lane max reused for the logsumexp shift and the argmax.  Padded
    # vote lanes carry a -1e30 bias: never the max, exp underflows to 0.
    maxval = jnp.max(post, axis=1, keepdims=True)                # (TN, 1)
    m_n = jnp.maximum(maxval, dummy)                             # (TN, 1)
    e = jnp.exp(post - m_n)                                      # (TN, Vp)
    denom = jnp.sum(e, axis=1, keepdims=True) + jnp.exp(dummy - m_n)
    clp_ref[0] = m_n + jnp.log(denom)                            # (TN, 1)
    # Exact reciprocal on the tiny (TN,1) column; probs stay normalized.
    pm_ref[0] = e * (1.0 / denom)                                # (TN, Vp)

    # First-max index over real votes (torch argmax tie-break), then one
    # gather matmul yields winner^T, winner_pres and the (float) index row.
    iota_v = lax.broadcasted_iota(jnp.int32, post.shape, 1)      # (TN, Vp)
    idx = jnp.min(jnp.where(post == maxval, iota_v, vp),
                  axis=1, keepdims=True)                         # (TN, 1)
    onehot = (iota_v == idx).astype(jnp.float32)                 # (TN, Vp)
    slab_ref[0] = lax.dot_general(g, onehot, (((1,), (1,)), ((), ())),
                                  preferred_element_type=jnp.float32)


def _vmem_config():
    """Generation-aware VMEM budget (tile sizing) and scoped limit."""
    cap = None
    try:
        cap = getattr(pltpu.get_tpu_info(), "vmem_capacity_bytes", None)
    except Exception:
        cap = None
    if not cap:
        cap = 64 * 1024 * 1024                 # conservative floor (v7x per-TC)
    budget = min(int(cap * 0.5), 96 * 1024 * 1024)
    limit = min(int(cap * 0.85), 120 * 1024 * 1024)
    return budget, limit


def _tile_bytes(tn, daug, drows, vp):
    """Per-step VMEM with PADDED tile footprints, I/O double-buffered."""
    sub8 = lambda r: ((r + 7) // 8) * 8
    io = (sub8(daug) * tn            # x_aug^T tile (lane-dense)
          + sub8(daug) * vp          # W (resident, still 2 buffers)
          + sub8(drows) * vp         # G
          + tn * vp                  # posterior-probs out tile
          + sub8(drows) * tn         # slab out tile
          + tn * 128)                # (TN,1) log-prob tile pads lanes to 128
    temps = 6 * tn * vp + 4 * tn * 128   # post/e/iota/onehot/... live ranges
    return 4 * (2 * io + temps)


def _choose_tile_n(n, batch, daug, drows, vp, budget):
    """Largest 128-multiple TN that fits the budget; keep >=4 grid steps."""
    n128 = ((n + 127) // 128) * 128
    tn = 128
    cand = 128
    while cand <= min(n128, 2048):
        if _tile_bytes(cand, daug, drows, vp) <= budget:
            tn = cand
        cand += 128
    while tn > 128 and batch * ((n128 + tn - 1) // tn) < 4:
        tn -= 128                              # more steps -> real pipelining
    return tn


def capsule_likelihood_forward(x, votes, scales, vote_presence_prob,
                               n_votes, presence=None):
    """Pallas version of OrderInvariantCapsuleLikelihood.forward."""
    x = x.astype(jnp.float32)
    votes = votes.astype(jnp.float32)
    scales = scales.astype(jnp.float32)
    vote_presence_prob = vote_presence_prob.astype(jnp.float32)

    B, N, D = x.shape
    V = votes.shape[1]
    Daug = D + 2                     # [x, ||x||^2, 1]
    Drows = D + 2                    # [votes^T, pres, vote index]
    Vp = ((V + 127) // 128) * 128    # pad votes to a lane multiple
    padV = Vp - V

    # ---------------- mixing distribution (tiny, XLA glue) ----------------
    ml = jnp.log(jnp.maximum(vote_presence_prob, _EPS))              # (B, V)
    mixing_logits = jnp.concatenate(
        [ml, jnp.full((B, 1), _DUMMY, jnp.float32)], axis=1)         # (B, V+1)
    mixing_log_prob = mixing_logits - jax.scipy.special.logsumexp(
        mixing_logits, axis=1, keepdims=True)
    mlp = mixing_log_prob[:, :V]                                     # (B, V)
    dummy = (mixing_log_prob[:, V] + _DUMMY).astype(jnp.float32)     # (B,)

    # ------- fold Gaussian log-prob + mixing bias into W (Daug, Vp) -------
    # post[n,j] = x.(inv_var*v_j) + ||x||^2*(-0.5*inv_var_j) + bias_j
    # NOTE: the ||x||^2 - 2x.v + ||v||^2 expansion can cancel catastrophically
    # for very large |x|,|v|; acceptable for likelihoods (see test tolerances).
    votes_t = jnp.transpose(votes, (0, 2, 1))                        # (B, D, V)
    inv_var = 1.0 / (scales * scales)                                # (B, V)
    v2 = jnp.sum(votes * votes, axis=2)                              # (B, V)
    bias = (-0.5 * inv_var * v2 - D * jnp.log(scales)
            - 0.5 * D * _LOG_2PI + mlp)                              # (B, V)
    W = jnp.concatenate([inv_var[:, None, :] * votes_t,
                         (-0.5 * inv_var)[:, None, :],
                         bias[:, None, :]], axis=1)                  # (B, Daug, V)
    G = jnp.concatenate([votes_t,
                         vote_presence_prob[:, None, :],
                         jnp.broadcast_to(
                             jnp.arange(V, dtype=jnp.float32)[None, None, :],
                             (B, 1, V))], axis=1)                    # (B, Drows, V)
    if padV:
        wpad = jnp.zeros((B, Daug, padV), jnp.float32).at[:, -1, :].set(_NEG_BIG)
        W = jnp.concatenate([W, wpad], axis=2)                       # (B, Daug, Vp)
        G = jnp.concatenate([G, jnp.zeros((B, Drows, padV), jnp.float32)], axis=2)

    # ---------------- tile size / VMEM budget (per-generation) -------------
    budget, vmem_limit = _vmem_config()
    TN = _choose_tile_n(N, B, Daug, Drows, Vp, budget)
    Np = ((N + TN - 1) // TN) * TN

    # ------------ augmented, TRANSPOSED points (lane-dense tiles) ----------
    x_p = x if Np == N else jnp.pad(x, ((0, 0), (0, Np - N), (0, 0)))
    xat = jnp.concatenate([jnp.transpose(x_p, (0, 2, 1)),
                           jnp.sum(x_p * x_p, axis=2)[:, None, :],
                           jnp.ones((B, 1, Np), jnp.float32)], axis=1)  # (B, Daug, Np)

    kernel = functools.partial(_capsule_kernel, Vp)

    grid_spec = pltpu.PrefetchScalarGridSpec(
        num_scalar_prefetch=1,                 # dummy logits -> SMEM
        grid=(B, Np // TN),
        in_specs=[
            pl.BlockSpec((1, Daug, TN), lambda b, n, d: (b, 0, n)),
            pl.BlockSpec((1, Daug, Vp), lambda b, n, d: (b, 0, 0)),
            pl.BlockSpec((1, Drows, Vp), lambda b, n, d: (b, 0, 0)),
        ],
        out_specs=[
            pl.BlockSpec((1, TN, Vp), lambda b, n, d: (b, n, 0)),
            pl.BlockSpec((1, Drows, TN), lambda b, n, d: (b, 0, n)),
            pl.BlockSpec((1, TN, 1), lambda b, n, d: (b, n, 0)),
        ],
    )
    out_shapes = (
        jax.ShapeDtypeStruct((B, Np, Vp), jnp.float32),   # posterior probs
        jax.ShapeDtypeStruct((B, Drows, Np), jnp.float32),  # packed slab
        jax.ShapeDtypeStruct((B, Np, 1), jnp.float32),    # per-point log prob
    )

    pm_pad, slab, clp = pl.pallas_call(
        kernel,
        out_shape=out_shapes,
        grid_spec=grid_spec,
        compiler_params=pltpu.CompilerParams(
            dimension_semantics=("parallel", "parallel"),
            vmem_limit_bytes=vmem_limit),
    )(dummy, xat, W, G)

    # ---------------- unpack slab + cheap glue ----------------
    winner = jnp.transpose(slab[:, :D, :N], (0, 2, 1))               # (B, N, D)
    winner_pres = slab[:, D, :N]                                     # (B, N)
    idx = jnp.round(slab[:, D + 1, :N]).astype(jnp.int32)            # (B, N)
    comp_logp = clp[:, :N, 0]                                        # (B, N)

    if presence is not None:
        comp_logp = comp_logp * presence.astype(jnp.float32)
    mixture_log_prob_per_batch = jnp.sum(comp_logp)

    vote_presence = (ml > _DUMMY).astype(jnp.float32)                # (B, V)
    is_from_capsule = idx // n_votes                                 # (B, N)
    # NOTE: when V or N is padded this slice re-reads the dominant output
    # stream once in XLA; keep the padded layout downstream if BW-bound.
    posterior_mixing_probs = pm_pad[:, :N, :V]                       # (B, N, V)

    return CapsuleLikelihoodTuple(
        log_prob=mixture_log_prob_per_batch,
        vote_presence=vote_presence,
        winner=winner,
        winner_pres=winner_pres,
        is_from_capsule=is_from_capsule,
        mixing_logits=mixing_logits,
        mixing_log_prob=mixing_log_prob,
        soft_winner=jnp.zeros_like(winner),
        soft_winner_pres=jnp.zeros_like(winner_pres),
        posterior_mixing_probs=posterior_mixing_probs,
    )


def _reference_forward(x, votes, scales, pres, n_votes):
    """Pure-JAX reference mirroring the torch broadcast semantics."""
    B, N, D = x.shape
    exp_x = x[:, :, None, :]                            # (B, N, 1, D)
    loc = votes[:, None, :, :]                          # (B, 1, V, D)
    sc = scales[:, None, :, None]                       # (B, 1, V, 1)
    logp = (-0.5 * ((exp_x - loc) / sc) ** 2
            - jnp.log(sc) - 0.5 * _LOG_2PI)
    vlp = jnp.sum(logp, axis=-1)                        # (B, N, V)
    vlp = jnp.concatenate([vlp, jnp.full((B, N, 1), _DUMMY)], axis=2)

    ml = jnp.log(jnp.maximum(pres, _EPS))
    mlf = jnp.concatenate([ml, jnp.full((B, 1), _DUMMY)], axis=1)
    mlp = mlf - jax.scipy.special.logsumexp(mlf, axis=1, keepdims=True)

    post = mlp[:, None, :] + vlp                        # (B, N, V+1)
    comp = jax.scipy.special.logsumexp(post, axis=2)    # (B, N)
    log_prob = jnp.sum(comp)

    idx = jnp.argmax(post[:, :, :-1], axis=2)           # (B, N)
    winner = jnp.take_along_axis(votes, idx[..., None], axis=1)
    winner_pres = jnp.take_along_axis(pres, idx, axis=1)
    vote_presence = (mlf[:, :-1] > mlf[:, -1:]).astype(jnp.float32)
    post_probs = jax.nn.softmax(post, axis=-1)[..., :-1]
    is_from = idx // n_votes
    return (log_prob, vote_presence, winner, winner_pres, is_from,
            mlf, mlp, post_probs)


if __name__ == "__main__":
    import numpy as np

    key = jax.random.PRNGKey(0)
    B, N, D = 2, 8, 6            # batch, input points, pose dim
    n_caps, n_votes = 3, 8
    V = n_caps * n_votes         # 24 total votes

    k1, k2, k3, k4 = jax.random.split(key, 4)
    x = jax.random.normal(k1, (B, N, D), jnp.float32)
    votes = jax.random.normal(k2, (B, V, D), jnp.float32)
    scales = jax.nn.softplus(jax.random.normal(k3, (B, V), jnp.float32)) + 0.1
    pres = jax.nn.sigmoid(jax.random.normal(k4, (B, V), jnp.float32))

    out = capsule_likelihood_forward(x, votes, scales, pres, n_votes)
    jax.block_until_ready(out)

    (r_logp, r_vpres, r_win, r_winp, r_ifc, r_mlf, r_mlp,
     r_post) = _reference_forward(x, votes, scales, pres, n_votes)

    np.testing.assert_allclose(out.log_prob, r_logp, rtol=1e-3, atol=1e-2)
    np.testing.assert_allclose(out.vote_presence, r_vpres, atol=1e-6)
    np.testing.assert_allclose(out.winner, r_win, rtol=1e-4, atol=1e-4)
    np.testing.assert_allclose(out.winner_pres, r_winp, rtol=1e-4, atol=1e-4)
    np.testing.assert_array_equal(np.asarray(out.is_from_capsule),
                                  np.asarray(r_ifc).astype(np.int32))
    np.testing.assert_allclose(out.mixing_logits, r_mlf, rtol=1e-5, atol=1e-5)
    np.testing.assert_allclose(out.mixing_log_prob, r_mlp, rtol=1e-5, atol=1e-5)
    np.testing.assert_allclose(out.posterior_mixing_probs, r_post,
                               rtol=1e-3, atol=1e-3)
    assert out.winner.shape == x.shape

    print("KERNEL_OK")
</pallas_src>

<mosaic_0001>
module attributes {stable_mosaic.version = 11 : i64} {
  func.func @_capsule_kernel(%arg0: i32, %arg1: i32, %arg2: memref<2xf32, #tpu.memory_space<smem>>, %arg3: memref<1x8x128xf32, #tpu.memory_space<vmem>>, %arg4: memref<1x8x128xf32, #tpu.memory_space<vmem>>, %arg5: memref<1x8x128xf32, #tpu.memory_space<vmem>>, %arg6: memref<1x128x128xf32, #tpu.memory_space<vmem>>, %arg7: memref<1x8x128xf32, #tpu.memory_space<vmem>>, %arg8: memref<1x128x1xf32, #tpu.memory_space<vmem>>) attributes {dimension_semantics = [#tpu.dimension_semantics<parallel>, #tpu.dimension_semantics<parallel>], iteration_bounds = array<i64: 2, 1>, scalar_prefetch = 1 : i64, scratch_operands = 0 : i64, tpu.core_type = #tpu.core_type<tc>, window_params = [{transform_indices = @transform_0, window_bounds = array<i64: 1, 8, 128>}, {transform_indices = @transform_1, window_bounds = array<i64: 1, 8, 128>}, {transform_indices = @transform_2, window_bounds = array<i64: 1, 8, 128>}, {transform_indices = @transform_3, window_bounds = array<i64: 1, 128, 128>}, {transform_indices = @transform_4, window_bounds = array<i64: 1, 8, 128>}, {transform_indices = @transform_5, window_bounds = array<i64: 1, 128, 1>}]} {
    %0 = arith.index_cast %arg0 : i32 to index
    %1 = memref.load %arg2[%0] : memref<2xf32, #tpu.memory_space<smem>>
    %c0 = arith.constant 0 : index
    %c0_0 = arith.constant 0 : index
    %c0_1 = arith.constant 0 : index
    %2 = vector.load %arg3[%c0, %c0_0, %c0_1] : memref<1x8x128xf32, #tpu.memory_space<vmem>>, vector<1x8x128xf32>
    %3 = vector.shape_cast %2 : vector<1x8x128xf32> to vector<8x128xf32>
    %c0_2 = arith.constant 0 : index
    %c0_3 = arith.constant 0 : index
    %c0_4 = arith.constant 0 : index
    %4 = vector.load %arg4[%c0_2, %c0_3, %c0_4] : memref<1x8x128xf32, #tpu.memory_space<vmem>>, vector<1x8x128xf32>
    %5 = vector.shape_cast %4 : vector<1x8x128xf32> to vector<8x128xf32>
    %c0_5 = arith.constant 0 : index
    %c0_6 = arith.constant 0 : index
    %c0_7 = arith.constant 0 : index
    %6 = vector.load %arg5[%c0_5, %c0_6, %c0_7] : memref<1x8x128xf32, #tpu.memory_space<vmem>>, vector<1x8x128xf32>
    %7 = vector.shape_cast %6 : vector<1x8x128xf32> to vector<8x128xf32>
    %cst = arith.constant dense<0.000000e+00> : vector<128x128xf32>
    %8 = tpu.matmul %3, %5, %cst {dimension_numbers = #tpu.dot_dimension_numbers<[0], [0], [1], [1], [0, 1, 1, 1], [], []>} : vector<8x128xf32>, vector<8x128xf32>, vector<128x128xf32> -> vector<128x128xf32>
    %cst_8 = arith.constant dense<0xFF800000> : vector<128xf32>
    %9 = vector.multi_reduction <maximumf>, %8, %cst_8 [1] : vector<128x128xf32> to vector<128xf32>
    %10 = vector.shape_cast %9 : vector<128xf32> to vector<128x1xf32>
    %11 = vector.broadcast %1 : f32 to vector<128x1xf32>
    %12 = arith.maximumf %10, %11 : vector<128x1xf32>
    %13 = vector.broadcast %12 : vector<128x1xf32> to vector<128x128xf32>
    %14 = arith.subf %8, %13 : vector<128x128xf32>
    %15 = math.exp %14 : vector<128x128xf32>
    %cst_9 = arith.constant dense<0.000000e+00> : vector<128xf32>
    %16 = vector.multi_reduction <add>, %15, %cst_9 [1] : vector<128x128xf32> to vector<128xf32>
    %17 = vector.shape_cast %16 : vector<128xf32> to vector<128x1xf32>
    %18 = vector.broadcast %1 : f32 to vector<128x1xf32>
    %19 = arith.subf %18, %12 : vector<128x1xf32>
    %20 = math.exp %19 : vector<128x1xf32>
    %21 = arith.addf %17, %20 : vector<128x1xf32>
    %22 = math.log %21 : vector<128x1xf32>
    %23 = arith.addf %12, %22 : vector<128x1xf32>
    %c0_10 = arith.constant 0 : index
    %c0_11 = arith.constant 0 : index
    %c0_12 = arith.constant 0 : index
    %24 = vector.load %arg8[%c0_10, %c0_11, %c0_12] : memref<1x128x1xf32, #tpu.memory_space<vmem>>, vector<1x128x1xf32>
    %25 = vector.shape_cast %24 : vector<1x128x1xf32> to vector<128x1xf32>
    %26 = vector.shape_cast %23 : vector<128x1xf32> to vector<1x128x1xf32>
    tpu.vector_store %arg8[%c0_10, %c0_11, %c0_12], %26 {strides = array<i32>} : memref<1x128x1xf32, #tpu.memory_space<vmem>>, vector<1x128x1xf32>,
    %cst_13 = arith.constant 1.000000e+00 : f32
    %27 = vector.broadcast %cst_13 : f32 to vector<128x1xf32>
    %28 = arith.divf %27, %21 : vector<128x1xf32>
    %29 = vector.broadcast %28 : vector<128x1xf32> to vector<128x128xf32>
    %30 = arith.mulf %15, %29 : vector<128x128xf32>
    %c0_14 = arith.constant 0 : index
    %c0_15 = arith.constant 0 : index
    %c0_16 = arith.constant 0 : index
    %31 = vector.load %arg6[%c0_14, %c0_15, %c0_16] : memref<1x128x128xf32, #tpu.memory_space<vmem>>, vector<1x128x128xf32>
    %32 = vector.shape_cast %31 : vector<1x128x128xf32> to vector<128x128xf32>
    %33 = vector.shape_cast %30 : vector<128x128xf32> to vector<1x128x128xf32>
    tpu.vector_store %arg6[%c0_14, %c0_15, %c0_16], %33 {strides = array<i32>} : memref<1x128x128xf32, #tpu.memory_space<vmem>>, vector<1x128x128xf32>,
    %34 = tpu.iota {dimensions = array<i32: 1>} : vector<128x128xi32>
    %35 = vector.broadcast %10 : vector<128x1xf32> to vector<128x128xf32>
    %36 = arith.cmpf oeq, %8, %35 : vector<128x128xf32>
    %c128_i32 = arith.constant 128 : i32
    %37 = vector.broadcast %c128_i32 : i32 to vector<128x128xi32>
    %38 = arith.select %36, %34, %37 : vector<128x128xi1>, vector<128x128xi32>
    %cst_17 = arith.constant dense<2147483647> : vector<128xi32>
    %39 = vector.multi_reduction <minsi>, %38, %cst_17 [1] : vector<128x128xi32> to vector<128xi32>
    %40 = vector.shape_cast %39 : vector<128xi32> to vector<128x1xi32>
    %41 = vector.broadcast %40 : vector<128x1xi32> to vector<128x128xi32>
    %42 = arith.cmpi eq, %34, %41 : vector<128x128xi32>
    %43 = arith.extui %42 : vector<128x128xi1> to vector<128x128xi32>
    %44 = arith.sitofp %43 : vector<128x128xi32> to vector<128x128xf32>
    %cst_18 = arith.constant dense<0.000000e+00> : vector<8x128xf32>
    %45 = tpu.matmul %7, %44, %cst_18 {dimension_numbers = #tpu.dot_dimension_numbers<[1], [1], [0], [0], [0, 0, 1, 0], [], []>} : vector<8x128xf32>, vector<128x128xf32>, vector<8x128xf32> -> vector<8x128xf32>
    %c0_19 = arith.constant 0 : index
    %c0_20 = arith.constant 0 : index
    %c0_21 = arith.constant 0 : index
    %46 = vector.load %arg7[%c0_19, %c0_20, %c0_21] : memref<1x8x128xf32, #tpu.memory_space<vmem>>, vector<1x8x128xf32>
    %47 = vector.shape_cast %46 : vector<1x8x128xf32> to vector<8x128xf32>
    %48 = vector.shape_cast %45 : vector<8x128xf32> to vector<1x8x128xf32>
    tpu.vector_store %arg7[%c0_19, %c0_20, %c0_21], %48 {strides = array<i32>} : memref<1x8x128xf32, #tpu.memory_space<vmem>>, vector<1x8x128xf32>,
    return
  }
  func.func @transform_0(%arg0: i32, %arg1: i32, %arg2: memref<2xf32, #tpu.memory_space<smem>>) -> (i32, i32, i32) {
    %c0_i32 = arith.constant 0 : i32
    %c0_i32_0 = arith.constant 0 : i32
    return %arg0, %c0_i32, %arg1 : i32, i32, i32
  }
  func.func @transform_1(%arg0: i32, %arg1: i32, %arg2: memref<2xf32, #tpu.memory_space<smem>>) -> (i32, i32, i32) {
    %c0_i32 = arith.constant 0 : i32
    %c0_i32_0 = arith.constant 0 : i32
    %c0_i32_1 = arith.constant 0 : i32
    return %arg0, %c0_i32, %c0_i32_0 : i32, i32, i32
  }
  func.func @transform_2(%arg0: i32, %arg1: i32, %arg2: memref<2xf32, #tpu.memory_space<smem>>) -> (i32, i32, i32) {
    %c0_i32 = arith.constant 0 : i32
    %c0_i32_0 = arith.constant 0 : i32
    %c0_i32_1 = arith.constant 0 : i32
    return %arg0, %c0_i32, %c0_i32_0 : i32, i32, i32
  }
  func.func @transform_3(%arg0: i32, %arg1: i32, %arg2: memref<2xf32, #tpu.memory_space<smem>>) -> (i32, i32, i32) {
    %c0_i32 = arith.constant 0 : i32
    %c0_i32_0 = arith.constant 0 : i32
    return %arg0, %arg1, %c0_i32 : i32, i32, i32
  }
  func.func @transform_4(%arg0: i32, %arg1: i32, %arg2: memref<2xf32, #tpu.memory_space<smem>>) -> (i32, i32, i32) {
    %c0_i32 = arith.constant 0 : i32
    %c0_i32_0 = arith.constant 0 : i32
    return %arg0, %c0_i32, %arg1 : i32, i32, i32
  }
  func.func @transform_5(%arg0: i32, %arg1: i32, %arg2: memref<2xf32, #tpu.memory_space<smem>>) -> (i32, i32, i32) {
    %c0_i32 = arith.constant 0 : i32
    %c0_i32_0 = arith.constant 0 : i32
    return %arg0, %arg1, %c0_i32 : i32, i32, i32
  }
}

</mosaic_0001>

<llo_original>
// kernel: tpu_custom_call.1
$region0: #{tpu_custom_call.1}
  #allocation0 [shape = 'u32[]', space=smem, size = 0x4, offset = 0x4, fixed_abs, tag = 'smem constant byte address 0x4 - core index']
  #allocation1 [shape = 'u32[144,128]{1,0:T(1,128)}', space=vmem, size = 0x12000, scoped, tag = 'internal scratch']
  #allocation2 [shape = 's32[1]{0}', space=sflag, size = 0x4, scoped, tag = 'scoped memory for tpu_custom_call.1']
  #allocation3 [shape = 'u8[512]{0}', space=smem, size = 0x200, scoped, tag = 'prefetched SMEM operand 0']
  %s0 = inlined_call_operand.hbm [shape: f32[2], index: 0, kind: input, shape index: {}]
  %s1 = inlined_call_operand.hbm [shape: f32[2,8,128], index: 1, kind: input, shape index: {}]
  %s2 = inlined_call_operand.hbm [shape: f32[2,8,128], index: 2, kind: input, shape index: {}]
  %s3 = inlined_call_operand.hbm [shape: f32[2,8,128], index: 3, kind: input, shape index: {}]
  %s4 = inlined_call_operand.hbm [shape: f32[2,128,128], index: 4, kind: output, shape index: {0}]
  %s5 = inlined_call_operand.hbm [shape: f32[2,8,128], index: 5, kind: output, shape index: {1}]
  %s6 = inlined_call_operand.vmem [shape: f32[2,128,1], index: 6, kind: output, shape index: {2}]
  %7 = xla_tuple %s4, %s5, %s6
  %s8 = sld [smem:[#allocation0]]
  $region73: #{tpu_custom_call.1} parent=0
    _
  %s10 = ssub.s32 1, %s8
  %s11 = scalar_select 0, %s10, %s8
  %13 = dma.hbm_to_smem %s0, 16, [#allocation3], [#allocation2]
  %14 = dma.done [#allocation2], 16
  %15 = sfence
  $region1: #{tpu_custom_call.1} parent=0
    #allocation4 [shape = 'u8[8192]{0}', space=vmem, size = 0x2000, scoped, tag = 'input window, operand 1']
    #allocation5 [shape = 's32[2]{0}', space=sflag, size = 0x8, scoped, tag = 'scoped memory for tpu_custom_call.1']
    #allocation6 [shape = 's32[2]{0}', space=sflag, size = 0x8, scoped, tag = 'scoped memory for tpu_custom_call.1']
    #allocation7 [shape = 'u8[8192]{0}', space=vmem, size = 0x2000, scoped, tag = 'input window, operand 2']
    #allocation8 [shape = 's32[2]{0}', space=sflag, size = 0x8, scoped, tag = 'scoped memory for tpu_custom_call.1']
    #allocation9 [shape = 'u8[8192]{0}', space=vmem, size = 0x2000, scoped, tag = 'input window, operand 3']
    #allocation10 [shape = 'u8[131072]{0}', space=vmem, size = 0x20000, scoped, tag = 'output window, operand 0']
    #allocation11 [shape = 'u8[8192]{0}', space=vmem, size = 0x2000, scoped, tag = 'output window, operand 1']
    #allocation12 [shape = 's32[2]{0}', space=sflag, size = 0x8, scoped, tag = 'scoped memory for tpu_custom_call.1']
    %16 = vsyncpa [#allocation5], 0
    %s17 = scalar_lea.sflag [#allocation5], 1
    %18 = vsyncpa %s17, 0
    %19 = vsyncpa [#allocation8], 0
    %s20 = scalar_lea.sflag [#allocation8], 1
    %21 = vsyncpa %s20, 0
    %22 = vsyncpa [#allocation6], 0
    %s23 = scalar_lea.sflag [#allocation6], 1
    %24 = vsyncpa %s23, 0
    %25 = vsyncpa [#allocation12], 0
    %s26 = scalar_lea.sflag [#allocation12], 1
    %27 = vsyncpa %s26, 0
    loop: start=0, step=1, limit=4
    $region2: #{tpu_custom_call.1} parent=1 // loop_pre_header
      _
    $region3: #{tpu_custom_call.1} parent=1 // loop_header
      %s29 = sphi 0, %s33
      %p30 = scmp.ge.s32.totalorder %s29, 4
      %s36 = sphi 0, %s48
      %s37 = sphi 0, %s44
      %s38 = sphi 0, %s36
      %s39 = sphi 0, %s37
      %s40 = sphi 0, %s38
      %s41 = sphi 0, %s39
      %s53 = sphi 0, %s55
      %s56 = sphi 0, %s53
      %s57 = sphi 0, %s56
      %s73 = sphi 0, %s57
      %s79 = sphi 0, %s81
      %s82 = sphi 0, %s79
      %s83 = sphi 0, %s82
      %s99 = sphi 0, %s83
      %s105 = sphi 0, %s107
      %s108 = sphi 0, %s105
      %s109 = sphi 0, %s108
      %s125 = sphi 0, %s109
      %s133 = sphi 0, %s135
      %s136 = sphi 0, %s133
      %s137 = sphi 0, %s136
      %s153 = sphi 0, %s137
      %s161 = sphi 0, %s163
      %s164 = sphi 0, %s161
      %s165 = sphi 0, %s164
      %s181 = sphi 0, %s165
      %s189 = sphi 0, %s191
      %s192 = sphi 0, %s189
      %s193 = sphi 0, %s192
      %s209 = sphi 0, %s193
    $region4: #{tpu_custom_call.1} parent=1 // loop_header_branch
      %32 = sbr.rel (%p30) target = $region8
    $region5: #{tpu_custom_call.1} parent=1 // loop_body
      %s34 = ssub.s32 %s29, 1
      %s35 = ssub.s32 %s29, 2
      %s42 = sadd.s32 1, %s37
      %p43 = scmp.ge.s32.totalorder %s42, 1
      %s44 = scalar_select %p43, 0, %s42
      %s45 = sadd.s32 1, %s36
      %s46 = scalar_select %p43, %s45, %s36
      %p47 = scmp.ge.s32.totalorder %s46, 2
      %s48 = scalar_select %p47, 0, %s46
      %s49 = ssub.s32 %s36, %s48
      %s50 = ssub.s32 %s37, %s44
      %s51 = sor.u32 %s49, %s50
      %p52 = scmp.eq.s32.totalorder %s51, 0
      %s54 = sadd.s32 %s53, 1
      %s55 = scalar_select %p52, %s53, %s54
      %p58 = pneg %p52
      %p59 = scmp.eq.s32.totalorder %s29, 1
      %p60 = por %p58, %p59
      %p61 = scmp.ne.s32.totalorder %s53, %s56
      %p62 = scmp.eq.s32.totalorder %s29, 0
      %p63 = por %p61, %p62
      %p64 = scmp.ne.s32.totalorder %s53, %s56
      %p65 = scmp.eq.s32.totalorder %s34, 1
      %p66 = por %p64, %p65
      %p67 = scmp.ne.s32.totalorder %s56, %s57
      %p68 = scmp.eq.s32.totalorder %s34, 0
      %p69 = por %p67, %p68
      %p70 = scmp.ne.s32.totalorder %s56, %s57
      %p71 = scmp.eq.s32.totalorder %s35, 1
      %p72 = por %p70, %p71
      %p74 = scmp.ne.s32.totalorder %s57, %s73
      %p75 = scmp.eq.s32.totalorder %s35, 0
      %p76 = por %p74, %p75
      %s77 = ssub.s32 %s36, %s48
      %p78 = scmp.eq.s32.totalorder %s77, 0
      %s80 = sadd.s32 %s79, 1
      %s81 = scalar_select %p78, %s79, %s80
      %p84 = pneg %p78
      %p85 = scmp.eq.s32.totalorder %s29, 1
      %p86 = por %p84, %p85
      %p87 = scmp.ne.s32.totalorder %s79, %s82
      %p88 = scmp.eq.s32.totalorder %s29, 0
      %p89 = por %p87, %p88
      %p90 = scmp.ne.s32.totalorder %s79, %s82
      %p91 = scmp.eq.s32.totalorder %s34, 1
      %p92 = por %p90, %p91
      %p93 = scmp.ne.s32.totalorder %s82, %s83
      %p94 = scmp.eq.s32.totalorder %s34, 0
      %p95 = por %p93, %p94
      %p96 = scmp.ne.s32.totalorder %s82, %s83
      %p97 = scmp.eq.s32.totalorder %s35, 1
      %p98 = por %p96, %p97
      %p100 = scmp.ne.s32.totalorder %s83, %s99
      %p101 = scmp.eq.s32.totalorder %s35, 0
      %p102 = por %p100, %p101
      %s103 = ssub.s32 %s36, %s48
      %p104 = scmp.eq.s32.totalorder %s103, 0
      %s106 = sadd.s32 %s105, 1
      %s107 = scalar_select %p104, %s105, %s106
      %p110 = pneg %p104
      %p111 = scmp.eq.s32.totalorder %s29, 1
      %p112 = por %p110, %p111
      %p113 = scmp.ne.s32.totalorder %s105, %s108
      %p114 = scmp.eq.s32.totalorder %s29, 0
      %p115 = por %p113, %p114
      %p116 = scmp.ne.s32.totalorder %s105, %s108
      %p117 = scmp.eq.s32.totalorder %s34, 1
      %p118 = por %p116, %p117
      %p119 = scmp.ne.s32.totalorder %s108, %s109
      %p120 = scmp.eq.s32.totalorder %s34, 0
      %p121 = por %p119, %p120
      %p122 = scmp.ne.s32.totalorder %s108, %s109
      %p123 = scmp.eq.s32.totalorder %s35, 1
      %p124 = por %p122, %p123
      %p126 = scmp.ne.s32.totalorder %s109, %s125
      %p127 = scmp.eq.s32.totalorder %s35, 0
      %p128 = por %p126, %p127
      %s129 = ssub.s32 %s36, %s48
      %s130 = ssub.s32 %s37, %s44
      %s131 = sor.u32 %s129, %s130
      %p132 = scmp.eq.s32.totalorder %s131, 0
      %s134 = sadd.s32 %s133, 1
      %s135 = scalar_select %p132, %s133, %s134
      %p138 = pneg %p132
      %p139 = scmp.eq.s32.totalorder %s29, 1
      %p140 = por %p138, %p139
      %p141 = scmp.ne.s32.totalorder %s133, %s136
      %p142 = scmp.eq.s32.totalorder %s29, 0
      %p143 = por %p141, %p142
      %p144 = scmp.ne.s32.totalorder %s133, %s136
      %p145 = scmp.eq.s32.totalorder %s34, 1
      %p146 = por %p144, %p145
      %p147 = scmp.ne.s32.totalorder %s136, %s137
      %p148 = scmp.eq.s32.totalorder %s34, 0
      %p149 = por %p147, %p148
      %p150 = scmp.ne.s32.totalorder %s136, %s137
      %p151 = scmp.eq.s32.totalorder %s35, 1
      %p152 = por %p150, %p151
      %p154 = scmp.ne.s32.totalorder %s137, %s153
      %p155 = scmp.eq.s32.totalorder %s35, 0
      %p156 = por %p154, %p155
      %s157 = ssub.s32 %s36, %s48
      %s158 = ssub.s32 %s37, %s44
      %s159 = sor.u32 %s157, %s158
      %p160 = scmp.eq.s32.totalorder %s159, 0
      %s162 = sadd.s32 %s161, 1
      %s163 = scalar_select %p160, %s161, %s162
      %p166 = pneg %p160
      %p167 = scmp.eq.s32.totalorder %s29, 1
      %p168 = por %p166, %p167
      %p169 = scmp.ne.s32.totalorder %s161, %s164
      %p170 = scmp.eq.s32.totalorder %s29, 0
      %p171 = por %p169, %p170
      %p172 = scmp.ne.s32.totalorder %s161, %s164
      %p173 = scmp.eq.s32.totalorder %s34, 1
      %p174 = por %p172, %p173
      %p175 = scmp.ne.s32.totalorder %s164, %s165
      %p176 = scmp.eq.s32.totalorder %s34, 0
      %p177 = por %p175, %p176
      %p178 = scmp.ne.s32.totalorder %s164, %s165
      %p179 = scmp.eq.s32.totalorder %s35, 1
      %p180 = por %p178, %p179
      %p182 = scmp.ne.s32.totalorder %s165, %s181
      %p183 = scmp.eq.s32.totalorder %s35, 0
      %p184 = por %p182, %p183
      %s185 = ssub.s32 %s36, %s48
      %s186 = ssub.s32 %s37, %s44
      %s187 = sor.u32 %s185, %s186
      %p188 = scmp.eq.s32.totalorder %s187, 0
      %s190 = sadd.s32 %s189, 1
      %s191 = scalar_select %p188, %s189, %s190
      %p194 = pneg %p188
      %p195 = scmp.eq.s32.totalorder %s29, 1
      %p196 = por %p194, %p195
      %p197 = scmp.ne.s32.totalorder %s189, %s192
      %p198 = scmp.eq.s32.totalorder %s29, 0
      %p199 = por %p197, %p198
      %p200 = scmp.ne.s32.totalorder %s189, %s192
      %p201 = scmp.eq.s32.totalorder %s34, 1
      %p202 = por %p200, %p201
      %p203 = scmp.ne.s32.totalorder %s192, %s193
      %p204 = scmp.eq.s32.totalorder %s34, 0
      %p205 = por %p203, %p204
      %p206 = scmp.ne.s32.totalorder %s192, %s193
      %p207 = scmp.eq.s32.totalorder %s35, 1
      %p208 = por %p206, %p207
      %p210 = scmp.ne.s32.totalorder %s193, %s209
      %p211 = scmp.eq.s32.totalorder %s35, 0
      %p212 = por %p210, %p211
      %p213 = scmp.le.s32.totalorder 1, %s29
      %p214 = scmp.lt.s32.totalorder %s29, 3
      %p215 = pnand %p213, %p214
      %p216 = pneg %p215
      // Predicated region
      $region9: #{tpu_custom_call.1} parent=5 // pred_check
        _
      $region10: #{tpu_custom_call.1} parent=5 // pred_check_branch
        %218 = sbr.rel (%p215) target = $region12
      $region11: #{tpu_custom_call.1} parent=5 // pred_region
        %s219 = ssub.s32 %s29, 1
      $region12: #{tpu_custom_call.1} parent=5 // pred_fallthru
        _
      %p220 = scmp.lt.s32.totalorder %s29, 2
      // Predicated region
      $region13: #{tpu_custom_call.1} parent=5 // pred_check
        %p221 = pneg %p220
      $region14: #{tpu_custom_call.1} parent=5 // pred_check_branch
        %223 = sbr.rel (%p221) target = $region16
      $region15: #{tpu_custom_call.1} parent=5 // pred_region
        // Predicated region
        $region17: #{tpu_custom_call.1} parent=15 // pred_check
          %p224 = pneg %p63
        $region18: #{tpu_custom_call.1} parent=15 // pred_check_branch
          %226 = sbr.rel (%p224) target = $region20
        $region19: #{tpu_custom_call.1} parent=15 // pred_region
          %s227 = sand.u32 %s53, 1
          %s228 = scalar_lea.sflag [#allocation5], %s227
          %s229 = sand.u32 %s53, 1
          %s230 = smul.addr %s229, 8
          %s231 = scalar_lea.vmem [#allocation4], %s230
          %s233 = ssub.s32 128, 128
          %234 = vsyncadd %s228, %s233
          %s235 = sadd.s32 %s37, %s36
          %s236 = smul.addr %s235, 128
          %s237 = scalar_lea.hbm %s1, %s236
          %s239 = sshll.u32 %s231, 4
          %s240 = int_to_ptr.vmem [resolvable:$true] %s239
          %242 = dma.hbm_to_vmem [thread:$0]  %s237, 128, %s240, %s228
        $region20: #{tpu_custom_call.1} parent=15 // pred_fallthru
          _
        // Predicated region
        $region21: #{tpu_custom_call.1} parent=15 // pred_check
          %p243 = pneg %p89
        $region22: #{tpu_custom_call.1} parent=15 // pred_check_branch
          %245 = sbr.rel (%p243) target = $region24
        $region23: #{tpu_custom_call.1} parent=15 // pred_region
          %s246 = sand.u32 %s29, 1
          %s247 = scalar_lea.sflag [#allocation8], %s246
          %s248 = sand.u32 %s79, 1
          %s249 = smul.addr %s248, 8
          %s250 = scalar_lea.vmem [#allocation7], %s249
          %s252 = ssub.s32 128, 128
          %253 = vsyncadd %s247, %s252
          %s254 = smul.addr %s36, 128
          %s255 = scalar_lea.hbm %s2, %s254
          %s257 = sshll.u32 %s250, 4
          %s258 = int_to_ptr.vmem [resolvable:$true] %s257
          %260 = dma.hbm_to_vmem [thread:$0]  %s255, 128, %s258, %s247
        $region24: #{tpu_custom_call.1} parent=15 // pred_fallthru
          _
        // Predicated region
        $region25: #{tpu_custom_call.1} parent=15 // pred_check
          %p261 = pneg %p115
        $region26: #{tpu_custom_call.1} parent=15 // pred_check_branch
          %263 = sbr.rel (%p261) target = $region28
        $region27: #{tpu_custom_call.1} parent=15 // pred_region
          %s264 = sand.u32 %s29, 1
          %s265 = scalar_lea.sflag [#allocation8], %s264
          %s266 = sand.u32 %s105, 1
          %s267 = smul.addr %s266, 8
          %s268 = scalar_lea.vmem [#allocation9], %s267
          %s270 = ssub.s32 128, 128
          %271 = vsyncadd %s265, %s270
          %s272 = smul.addr %s36, 128
          %s273 = scalar_lea.hbm %s3, %s272
          %s275 = sshll.u32 %s268, 4
          %s276 = int_to_ptr.vmem [resolvable:$true] %s275
          %278 = dma.hbm_to_vmem [thread:$0]  %s273, 128, %s276, %s265
        $region28: #{tpu_custom_call.1} parent=15 // pred_fallthru
          _
      $region16: #{tpu_custom_call.1} parent=5 // pred_fallthru
        _
      %p279 = scmp.le.s32.totalorder 1, %s29
      %p280 = scmp.lt.s32.totalorder %s29, 3
      %p281 = pnand %p279, %p280
      %p282 = pneg %p281
      // Predicated region
      $region29: #{tpu_custom_call.1} parent=5 // pred_check
        _
      $region30: #{tpu_custom_call.1} parent=5 // pred_check_branch
        %284 = sbr.rel (%p281) target = $region32
      $region31: #{tpu_custom_call.1} parent=5 // pred_region
        %s285 = ssub.s32 %s29, 1
        %s286 = sand.u32 %s56, 1
        %s287 = scalar_lea.sflag [#allocation5], %s286
        %s288 = sand.u32 %s56, 1
        %s289 = smul.addr %s288, 8
        %s290 = scalar_lea.vmem [#allocation4], %s289
        // Predicated region
        $region33: #{tpu_custom_call.1} parent=31 // pred_check
          %p291 = pneg %p69
        $region34: #{tpu_custom_call.1} parent=31 // pred_check_branch
          %293 = sbr.rel (%p291) target = $region36
        $region35: #{tpu_custom_call.1} parent=31 // pred_region
          %294 = dma.done %s287, 128
        $region36: #{tpu_custom_call.1} parent=31 // pred_fallthru
          _
        %s295 = sand.u32 %s34, 1
        %s296 = scalar_lea.sflag [#allocation8], %s295
        %s297 = sand.u32 %s82, 1
        %s298 = smul.addr %s297, 8
        %s299 = scalar_lea.vmem [#allocation7], %s298
        // Predicated region
        $region37: #{tpu_custom_call.1} parent=31 // pred_check
          %p300 = pneg %p95
        $region38: #{tpu_custom_call.1} parent=31 // pred_check_branch
          %302 = sbr.rel (%p300) target = $region40
        $region39: #{tpu_custom_call.1} parent=31 // pred_region
          %303 = dma.done %s296, 128
        $region40: #{tpu_custom_call.1} parent=31 // pred_fallthru
          _
        %s304 = sand.u32 %s34, 1
        %s305 = scalar_lea.sflag [#allocation8], %s304
        %s306 = sand.u32 %s108, 1
        %s307 = smul.addr %s306, 8
        %s308 = scalar_lea.vmem [#allocation9], %s307
        // Predicated region
        $region41: #{tpu_custom_call.1} parent=31 // pred_check
          %p309 = pneg %p121
        $region42: #{tpu_custom_call.1} parent=31 // pred_check_branch
          %311 = sbr.rel (%p309) target = $region44
        $region43: #{tpu_custom_call.1} parent=31 // pred_region
          %312 = dma.done %s305, 128
        $region44: #{tpu_custom_call.1} parent=31 // pred_fallthru
          _
        %s313 = sand.u32 %s56, 1
        %s314 = scalar_lea.sflag [#allocation5], %s313
        %s315 = sand.u32 %s56, 1
        %s316 = smul.addr %s315, 8
        %s317 = scalar_lea.vmem [#allocation4], %s316
        %p318 = pneg %p69
        %p319 = pneg %p66
        %s320 = sand.u32 %s34, 1
        %s321 = scalar_lea.sflag [#allocation8], %s320
        %s322 = sand.u32 %s82, 1
        %s323 = smul.addr %s322, 8
        %s324 = scalar_lea.vmem [#allocation7], %s323
        %p325 = pneg %p95
        %p326 = pneg %p92
        %s327 = sand.u32 %s34, 1
        %s328 = scalar_lea.sflag [#allocation8], %s327
        %s329 = sand.u32 %s108, 1
        %s330 = smul.addr %s329, 8
        %s331 = scalar_lea.vmem [#allocation9], %s330
        %p332 = pneg %p121
        %p333 = pneg %p118
        %p334 = pneg %p149
        %p335 = pneg %p146
        %s336 = sand.u32 %s136, 1
        %s337 = scalar_lea.sflag [#allocation6], %s336
        %s338 = sand.u32 %s136, 1
        %s339 = smul.addr %s338, 128
        %s340 = scalar_lea.vmem [#allocation10], %s339
        %p341 = pneg %p177
        %p342 = pneg %p174
        %s343 = sand.u32 %s164, 1
        %s344 = scalar_lea.sflag [#allocation12], %s343
        %s345 = sand.u32 %s164, 1
        %s346 = smul.addr %s345, 8
        %s347 = scalar_lea.vmem [#allocation11], %s346
        %p348 = pneg %p205
        %p349 = pneg %p202
        %s350 = smul.u32 16, %s39
        %p351 = scmp.lt.s32.totalorder %s38, 1
        %s352 = scalar_select %p351, %s38, 1
        %p353 = scmp.lt.s32.totalorder %s350, 15
        %s354 = scalar_select %p353, %s350, 15
        %s355 = smul.addr %s352, 16
        %s356 = sadd.s32 %s354, %s355
        %s357 = smul.addr %s356, 8
        %s358 = scalar_lea.vmem %s6, %s357
        %s359 = smul.u32 16, %s39
        %s360 = smul.u32 16, %s39
        %p361 = scmp.lt.s32.totalorder %s38, 1
        %s362 = scalar_select %p361, %s38, 1
        %p363 = scmp.lt.s32.totalorder %s360, 15
        %s364 = scalar_select %p363, %s360, 15
        %s365 = smul.addr %s362, 16
        %s366 = sadd.s32 %s364, %s365
        %s367 = smul.addr %s366, 8
        %s368 = scalar_lea.vmem %s6, %s367
        %s369 = smul.u32 16, %s39
        %s370 = sld [smem:[#allocation3 + %s38]]
        %v371 = vld [vmem:[%s290] sm:$0xff]
        %v372 = vld [vmem:[%s299] sm:$0xff]
        %v373 = vld [vmem:[%s308] sm:$0xff]
        %374 = vxpose.xlu0.b32.start [1/16] %v371, 128
        %375 = vxpose.xlu0.b32.cont [2/16] 0.0, 128
        %376 = vxpose.xlu0.b32.cont [3/16] 0.0, 128
        %377 = vxpose.xlu0.b32.cont [4/16] 0.0, 128
        %378 = vxpose.xlu0.b32.cont [5/16] 0.0, 128
        %379 = vxpose.xlu0.b32.cont [6/16] 0.0, 128
        %380 = vxpose.xlu0.b32.cont [7/16] 0.0, 128
        %381 = vxpose.xlu0.b32.cont [8/16] 0.0, 128
        %382 = vxpose.xlu0.b32.cont [9/16] 0.0, 128
        %383 = vxpose.xlu0.b32.cont [10/16] 0.0, 128
        %384 = vxpose.xlu0.b32.cont [11/16] 0.0, 128
        %385 = vxpose.xlu0.b32.cont [12/16] 0.0, 128
        %386 = vxpose.xlu0.b32.cont [13/16] 0.0, 128
        %387 = vxpose.xlu0.b32.cont [14/16] 0.0, 128
        %388 = vxpose.xlu0.b32.cont [15/16] 0.0, 128
        %389 = vxpose.xlu0.b32.end [16/16] 0.0, 128
        %v390 = vpop.trf.xlu0
        %v391 = vpop.trf.xlu0
        %v392 = vpop.trf.xlu0
        %v393 = vpop.trf.xlu0
        %v394 = vpop.trf.xlu0
        %v395 = vpop.trf.xlu0
        %v396 = vpop.trf.xlu0
        %v397 = vpop.trf.xlu0
        %v398 = vpop.trf.xlu0
        %v399 = vpop.trf.xlu0
        %v400 = vpop.trf.xlu0
        %v401 = vpop.trf.xlu0
        %v402 = vpop.trf.xlu0
        %v403 = vpop.trf.xlu0
        %v404 = vpop.trf.xlu0
        %v405 = vpop.trf.xlu0
        %vm406 = vcmask 64512
        %v408 = vsel %vm406, %v390, 0
        %v411 = vsel %vm406, %v391, 0
        %v414 = vsel %vm406, %v392, 0
        %v417 = vsel %vm406, %v393, 0
        %v420 = vsel %vm406, %v394, 0
        %v423 = vsel %vm406, %v395, 0
        %v426 = vsel %vm406, %v396, 0
        %v429 = vsel %vm406, %v397, 0
        %v432 = vsel %vm406, %v398, 0
        %v435 = vsel %vm406, %v399, 0
        %v438 = vsel %vm406, %v400, 0
        %v441 = vsel %vm406, %v401, 0
        %v444 = vsel %vm406, %v402, 0
        %v447 = vsel %vm406, %v403, 0
        %v450 = vsel %vm406, %v404, 0
        %v453 = vsel %vm406, %v405, 0
        %455 = vmatprep.subr.mxu0 0.0
        %456 = vmatpush1.msra.mxu0 %v372
        %457 = vmatprep.subr.mxu0 0.0
        %458 = vmatpush1.msra.mxu0 0.0
        %459 = vmatprep.subr.mxu0 0.0
        %460 = vmatpush1.msra.mxu0 0.0
        %461 = vmatprep.subr.mxu0 0.0
        %462 = vmatpush1.msra.mxu0 0.0
        %463 = vmatprep.subr.mxu0 0.0
        %464 = vmatpush1.msra.mxu0 0.0
        %465 = vmatprep.subr.mxu0 0.0
        %466 = vmatpush1.msra.mxu0 0.0
        %467 = vmatprep.subr.mxu0 0.0
        %468 = vmatpush1.msra.mxu0 0.0
        %469 = vmatprep.subr.mxu0 0.0
        %470 = vmatpush1.msra.mxu0 0.0
        %471 = vmatprep.subr.mxu0 0.0
        %472 = vmatpush1.msra.mxu0 0.0
        %473 = vmatprep.subr.mxu0 0.0
        %474 = vmatpush1.msra.mxu0 0.0
        %475 = vmatprep.subr.mxu0 0.0
        %476 = vmatpush1.msra.mxu0 0.0
        %477 = vmatprep.subr.mxu0 0.0
        %478 = vmatpush1.msra.mxu0 0.0
        %479 = vmatprep.subr.mxu0 0.0
        %480 = vmatpush1.msra.mxu0 0.0
        %481 = vmatprep.subr.mxu0 0.0
        %482 = vmatpush1.msra.mxu0 0.0
        %483 = vmatprep.subr.mxu0 0.0
        %484 = vmatpush1.msra.mxu0 0.0
        %485 = vmatprep.subr.mxu0 0.0
        %486 = vmatpush1.msra.mxu0 0.0
        %487 = vmatprep.subr.mxu0 0.0
        %488 = vmatpush1.msra.mxu0 0.0
        %489 = vmatprep.subr.mxu0 0.0
        %490 = vmatpush1.msra.mxu0 0.0
        %491 = vmatprep.subr.mxu0 0.0
        %492 = vmatpush1.msra.mxu0 0.0
        %493 = vmatprep.subr.mxu0 0.0
        %494 = vmatpush1.msra.mxu0 0.0
        %495 = vmatprep.subr.mxu0 0.0
        %496 = vmatpush1.msra.mxu0 0.0
        %497 = vmatprep.subr.mxu0 0.0
        %498 = vmatpush1.msra.mxu0 0.0
        %499 = vmatprep.subr.mxu0 0.0
        %500 = vmatpush1.msra.mxu0 0.0
        %501 = vmatprep.subr.mxu0 0.0
        %502 = vmatpush1.msra.mxu0 0.0
        %503 = vmatprep.subr.mxu0 0.0
        %504 = vmatpush1.msra.mxu0 0.0
        %505 = vmatprep.subr.mxu0 0.0
        %506 = vmatpush1.msra.mxu0 0.0
        %507 = vmatprep.subr.mxu0 0.0
        %508 = vmatpush1.msra.mxu0 0.0
        %509 = vmatprep.subr.mxu0 0.0
        %510 = vmatpush1.msra.mxu0 0.0
        %511 = vmatprep.subr.mxu0 0.0
        %512 = vmatpush1.msra.mxu0 0.0
        %513 = vmatprep.subr.mxu0 0.0
        %514 = vmatpush1.msra.mxu0 0.0
        %515 = vmatprep.subr.mxu0 0.0
        %516 = vmatpush1.msra.mxu0 0.0
        %517 = vmatprep.subr.mxu0 0.0
        %518 = vmatpush1.msra.mxu0 0.0
        %519 = vmatprep.mubr.f32.mxu0 0.0
        %520 = vmatmul.mubr.f32.gmra.mrb[0].mxu0 %v408
        %v521 = vpop.f32.mrb[0].mxu0
        %v522 = vadd.f32 0.0, %v521
        %v523 = vpop.f32.mrb[0].mxu0
        %524 = vmatprep.mubr.f32.mxu0 0.0
        %525 = vmatmul.mubr.f32.gmra.mrb[0].mxu0 %v411
        %v526 = vpop.f32.mrb[0].mxu0
        %v527 = vadd.f32 0.0, %v526
        %v528 = vpop.f32.mrb[0].mxu0
        %529 = vmatprep.mubr.f32.mxu0 0.0
        %530 = vmatmul.mubr.f32.gmra.mrb[0].mxu0 %v414
        %v531 = vpop.f32.mrb[0].mxu0
        %v532 = vadd.f32 0.0, %v531
        %v533 = vpop.f32.mrb[0].mxu0
        %534 = vmatprep.mubr.f32.mxu0 0.0
        %535 = vmatmul.mubr.f32.gmra.mrb[0].mxu0 %v417
        %v536 = vpop.f32.mrb[0].mxu0
        %v537 = vadd.f32 0.0, %v536
        %v538 = vpop.f32.mrb[0].mxu0
        %539 = vmatprep.mubr.f32.mxu0 0.0
        %540 = vmatmul.mubr.f32.gmra.mrb[0].mxu0 %v420
        %v541 = vpop.f32.mrb[0].mxu0
        %v542 = vadd.f32 0.0, %v541
        %v543 = vpop.f32.mrb[0].mxu0
        %544 = vmatprep.mubr.f32.mxu0 0.0
        %545 = vmatmul.mubr.f32.gmra.mrb[0].mxu0 %v423
        %v546 = vpop.f32.mrb[0].mxu0
        %v547 = vadd.f32 0.0, %v546
        %v548 = vpop.f32.mrb[0].mxu0
        %549 = vmatprep.mubr.f32.mxu0 0.0
        %550 = vmatmul.mubr.f32.gmra.mrb[0].mxu0 %v426
        %v551 = vpop.f32.mrb[0].mxu0
        %v552 = vadd.f32 0.0, %v551
        %v553 = vpop.f32.mrb[0].mxu0
        %554 = vmatprep.mubr.f32.mxu0 0.0
        %555 = vmatmul.mubr.f32.gmra.mrb[0].mxu0 %v429
        %v556 = vpop.f32.mrb[0].mxu0
        %v557 = vadd.f32 0.0, %v556
        %v558 = vpop.f32.mrb[0].mxu0
        %559 = vmatprep.mubr.f32.mxu0 0.0
        %560 = vmatmul.mubr.f32.gmra.mrb[0].mxu0 %v432
        %v561 = vpop.f32.mrb[0].mxu0
        %v562 = vadd.f32 0.0, %v561
        %v563 = vpop.f32.mrb[0].mxu0
        %564 = vmatprep.mubr.f32.mxu0 0.0
        %565 = vmatmul.mubr.f32.gmra.mrb[0].mxu0 %v435
        %v566 = vpop.f32.mrb[0].mxu0
        %v567 = vadd.f32 0.0, %v566
        %v568 = vpop.f32.mrb[0].mxu0
        %569 = vmatprep.mubr.f32.mxu0 0.0
        %570 = vmatmul.mubr.f32.gmra.mrb[0].mxu0 %v438
        %v571 = vpop.f32.mrb[0].mxu0
        %v572 = vadd.f32 0.0, %v571
        %v573 = vpop.f32.mrb[0].mxu0
        %574 = vmatprep.mubr.f32.mxu0 0.0
        %575 = vmatmul.mubr.f32.gmra.mrb[0].mxu0 %v441
        %v576 = vpop.f32.mrb[0].mxu0
        %v577 = vadd.f32 0.0, %v576
        %v578 = vpop.f32.mrb[0].mxu0
        %579 = vmatprep.mubr.f32.mxu0 0.0
        %580 = vmatmul.mubr.f32.gmra.mrb[0].mxu0 %v444
        %v581 = vpop.f32.mrb[0].mxu0
        %v582 = vadd.f32 0.0, %v581
        %v583 = vpop.f32.mrb[0].mxu0
        %584 = vmatprep.mubr.f32.mxu0 0.0
        %585 = vmatmul.mubr.f32.gmra.mrb[0].mxu0 %v447
        %v586 = vpop.f32.mrb[0].mxu0
        %v587 = vadd.f32 0.0, %v586
        %v588 = vpop.f32.mrb[0].mxu0
        %589 = vmatprep.mubr.f32.mxu0 0.0
        %590 = vmatmul.mubr.f32.gmra.mrb[0].mxu0 %v450
        %v591 = vpop.f32.mrb[0].mxu0
        %v592 = vadd.f32 0.0, %v591
        %v593 = vpop.f32.mrb[0].mxu0
        %594 = vmatprep.mubr.f32.mxu0 0.0
        %595 = vmatmul.mubr.f32.gmra.mrb[0].mxu0 %v453
        %v596 = vpop.f32.mrb[0].mxu0
        %v597 = vadd.f32 0.0, %v596
        %v598 = vpop.f32.mrb[0].mxu0
        %599 = vdwg.mxu0
        %600 = vmax.xlane.f32.xlu0 %v522
        %v601 = vpop.xlane.xlu0 %600
        %602 = vmax.xlane.f32.xlu0 %v527
        %v603 = vpop.xlane.xlu0 %602
        %604 = vmax.xlane.f32.xlu0 %v532
        %v605 = vpop.xlane.xlu0 %604
        %606 = vmax.xlane.f32.xlu0 %v537
        %v607 = vpop.xlane.xlu0 %606
        %608 = vmax.xlane.f32.xlu0 %v542
        %v609 = vpop.xlane.xlu0 %608
        %610 = vmax.xlane.f32.xlu0 %v547
        %v611 = vpop.xlane.xlu0 %610
        %612 = vmax.xlane.f32.xlu0 %v552
        %v613 = vpop.xlane.xlu0 %612
        %614 = vmax.xlane.f32.xlu0 %v557
        %v615 = vpop.xlane.xlu0 %614
        %616 = vmax.xlane.f32.xlu0 %v562
        %v617 = vpop.xlane.xlu0 %616
        %618 = vmax.xlane.f32.xlu0 %v567
        %v619 = vpop.xlane.xlu0 %618
        %620 = vmax.xlane.f32.xlu0 %v572
        %v621 = vpop.xlane.xlu0 %620
        %622 = vmax.xlane.f32.xlu0 %v577
        %v623 = vpop.xlane.xlu0 %622
        %624 = vmax.xlane.f32.xlu0 %v582
        %v625 = vpop.xlane.xlu0 %624
        %626 = vmax.xlane.f32.xlu0 %v587
        %v627 = vpop.xlane.xlu0 %626
        %628 = vmax.xlane.f32.xlu0 %v592
        %v629 = vpop.xlane.xlu0 %628
        %630 = vmax.xlane.f32.xlu0 %v597
        %v631 = vpop.xlane.xlu0 %630
        %v632 = vstv %s370
        %v633 = vmax.f32 %v601, %v632
        %v634 = vmax.f32 %v603, %v632
        %v635 = vmax.f32 %v605, %v632
        %v636 = vmax.f32 %v607, %v632
        %v637 = vmax.f32 %v609, %v632
        %v638 = vmax.f32 %v611, %v632
        %v639 = vmax.f32 %v613, %v632
        %v640 = vmax.f32 %v615, %v632
        %v641 = vmax.f32 %v617, %v632
        %v642 = vmax.f32 %v619, %v632
        %v643 = vmax.f32 %v621, %v632
        %v644 = vmax.f32 %v623, %v632
        %v645 = vmax.f32 %v625, %v632
        %v646 = vmax.f32 %v627, %v632
        %v647 = vmax.f32 %v629, %v632
        %v648 = vmax.f32 %v631, %v632
        %v649 = vsub.f32 %v522, %v633
        %v650 = vsub.f32 %v527, %v634
        %v651 = vsub.f32 %v532, %v635
        %v652 = vsub.f32 %v537, %v636
        %v653 = vsub.f32 %v542, %v637
        %v654 = vsub.f32 %v547, %v638
        %v655 = vsub.f32 %v552, %v639
        %v656 = vsub.f32 %v557, %v640
        %v657 = vsub.f32 %v562, %v641
        %v658 = vsub.f32 %v567, %v642
        %v659 = vsub.f32 %v572, %v643
        %v660 = vsub.f32 %v577, %v644
        %v661 = vsub.f32 %v582, %v645
        %v662 = vsub.f32 %v587, %v646
        %v663 = vsub.f32 %v592, %v647
        %v664 = vsub.f32 %v597, %v648
        %v665 = vmul.f32 %v649, 1.442695
        %v666 = vpow.pop %v665
        %v667 = vmul.f32 %v650, 1.442695
        %v668 = vpow.pop %v667
        %v669 = vmul.f32 %v651, 1.442695
        %v670 = vpow.pop %v669
        %v671 = vmul.f32 %v652, 1.442695
        %v672 = vpow.pop %v671
        %v673 = vmul.f32 %v653, 1.442695
        %v674 = vpow.pop %v673
        %v675 = vmul.f32 %v654, 1.442695
        %v676 = vpow.pop %v675
        %v677 = vmul.f32 %v655, 1.442695
        %v678 = vpow.pop %v677
        %v679 = vmul.f32 %v656, 1.442695
        %v680 = vpow.pop %v679
        %v681 = vmul.f32 %v657, 1.442695
        %v682 = vpow.pop %v681
        %v683 = vmul.f32 %v658, 1.442695
        %v684 = vpow.pop %v683
        %v685 = vmul.f32 %v659, 1.442695
        %v686 = vpow.pop %v685
        %v687 = vmul.f32 %v660, 1.442695
        %v688 = vpow.pop %v687
        %v689 = vmul.f32 %v661, 1.442695
        %v690 = vpow.pop %v689
        %v691 = vmul.f32 %v662, 1.442695
        %v692 = vpow.pop %v691
        %v693 = vmul.f32 %v663, 1.442695
        %v694 = vpow.pop %v693
        %v695 = vmul.f32 %v664, 1.442695
        %v696 = vpow.pop %v695
        %697 = vadd.xlane.f32.xlu0 %v666
        %v698 = vpop.xlane.xlu0 %697
        %699 = vadd.xlane.f32.xlu0 %v668
        %v700 = vpop.xlane.xlu0 %699
        %701 = vadd.xlane.f32.xlu0 %v670
        %v702 = vpop.xlane.xlu0 %701
        %703 = vadd.xlane.f32.xlu0 %v672
        %v704 = vpop.xlane.xlu0 %703
        %705 = vadd.xlane.f32.xlu0 %v674
        %v706 = vpop.xlane.xlu0 %705
        %707 = vadd.xlane.f32.xlu0 %v676
        %v708 = vpop.xlane.xlu0 %707
        %709 = vadd.xlane.f32.xlu0 %v678
        %v710 = vpop.xlane.xlu0 %709
        %711 = vadd.xlane.f32.xlu0 %v680
        %v712 = vpop.xlane.xlu0 %711
        %713 = vadd.xlane.f32.xlu0 %v682
        %v714 = vpop.xlane.xlu0 %713
        %715 = vadd.xlane.f32.xlu0 %v684
        %v716 = vpop.xlane.xlu0 %715
        %717 = vadd.xlane.f32.xlu0 %v686
        %v718 = vpop.xlane.xlu0 %717
        %719 = vadd.xlane.f32.xlu0 %v688
        %v720 = vpop.xlane.xlu0 %719
        %721 = vadd.xlane.f32.xlu0 %v690
        %v722 = vpop.xlane.xlu0 %721
        %723 = vadd.xlane.f32.xlu0 %v692
        %v724 = vpop.xlane.xlu0 %723
        %725 = vadd.xlane.f32.xlu0 %v694
        %v726 = vpop.xlane.xlu0 %725
        %727 = vadd.xlane.f32.xlu0 %v696
        %v728 = vpop.xlane.xlu0 %727
        %v729 = vsub.f32 %v632, %v633
        %v730 = vsub.f32 %v632, %v634
        %v731 = vsub.f32 %v632, %v635
        %v732 = vsub.f32 %v632, %v636
        %v733 = vsub.f32 %v632, %v637
        %v734 = vsub.f32 %v632, %v638
        %v735 = vsub.f32 %v632, %v639
        %v736 = vsub.f32 %v632, %v640
        %v737 = vsub.f32 %v632, %v641
        %v738 = vsub.f32 %v632, %v642
        %v739 = vsub.f32 %v632, %v643
        %v740 = vsub.f32 %v632, %v644
        %v741 = vsub.f32 %v632, %v645
        %v742 = vsub.f32 %v632, %v646
        %v743 = vsub.f32 %v632, %v647
        %v744 = vsub.f32 %v632, %v648
        %v745 = vmul.f32 %v729, 1.442695
        %v746 = vpow.pop %v745
        %v747 = vmul.f32 %v730, 1.442695
        %v748 = vpow.pop %v747
        %v749 = vmul.f32 %v731, 1.442695
        %v750 = vpow.pop %v749
        %v751 = vmul.f32 %v732, 1.442695
        %v752 = vpow.pop %v751
        %v753 = vmul.f32 %v733, 1.442695
        %v754 = vpow.pop %v753
        %v755 = vmul.f32 %v734, 1.442695
        %v756 = vpow.pop %v755
        %v757 = vmul.f32 %v735, 1.442695
        %v758 = vpow.pop %v757
        %v759 = vmul.f32 %v736, 1.442695
        %v760 = vpow.pop %v759
        %v761 = vmul.f32 %v737, 1.442695
        %v762 = vpow.pop %v761
        %v763 = vmul.f32 %v738, 1.442695
        %v764 = vpow.pop %v763
        %v765 = vmul.f32 %v739, 1.442695
        %v766 = vpow.pop %v765
        %v767 = vmul.f32 %v740, 1.442695
        %v768 = vpow.pop %v767
        %v769 = vmul.f32 %v741, 1.442695
        %v770 = vpow.pop %v769
        %v771 = vmul.f32 %v742, 1.442695
        %v772 = vpow.pop %v771
        %v773 = vmul.f32 %v743, 1.442695
        %v774 = vpow.pop %v773
        %v775 = vmul.f32 %v744, 1.442695
        %v776 = vpow.pop %v775
        %v777 = vadd.f32 %v698, %v746
        %v778 = vadd.f32 %v700, %v748
        %v779 = vadd.f32 %v702, %v750
        %v780 = vadd.f32 %v704, %v752
        %v781 = vadd.f32 %v706, %v754
        %v782 = vadd.f32 %v708, %v756
        %v783 = vadd.f32 %v710, %v758
        %v784 = vadd.f32 %v712, %v760
        %v785 = vadd.f32 %v714, %v762
        %v786 = vadd.f32 %v716, %v764
        %v787 = vadd.f32 %v718, %v766
        %v788 = vadd.f32 %v720, %v768
        %v789 = vadd.f32 %v722, %v770
        %v790 = vadd.f32 %v724, %v772
        %v791 = vadd.f32 %v726, %v774
        %v792 = vadd.f32 %v728, %v776
        %v793 = vlog2.pop %v777
        %v794 = vmul.f32 %v793, 0.6931472
        %v795 = vlog2.pop %v778
        %v796 = vmul.f32 %v795, 0.6931472
        %v797 = vlog2.pop %v779
        %v798 = vmul.f32 %v797, 0.6931472
        %v799 = vlog2.pop %v780
        %v800 = vmul.f32 %v799, 0.6931472
        %v801 = vlog2.pop %v781
        %v802 = vmul.f32 %v801, 0.6931472
        %v803 = vlog2.pop %v782
        %v804 = vmul.f32 %v803, 0.6931472
        %v805 = vlog2.pop %v783
        %v806 = vmul.f32 %v805, 0.6931472
        %v807 = vlog2.pop %v784
        %v808 = vmul.f32 %v807, 0.6931472
        %v809 = vlog2.pop %v785
        %v810 = vmul.f32 %v809, 0.6931472
        %v811 = vlog2.pop %v786
        %v812 = vmul.f32 %v811, 0.6931472
        %v813 = vlog2.pop %v787
        %v814 = vmul.f32 %v813, 0.6931472
        %v815 = vlog2.pop %v788
        %v816 = vmul.f32 %v815, 0.6931472
        %v817 = vlog2.pop %v789
        %v818 = vmul.f32 %v817, 0.6931472
        %v819 = vlog2.pop %v790
        %v820 = vmul.f32 %v819, 0.6931472
        %v821 = vlog2.pop %v791
        %v822 = vmul.f32 %v821, 0.6931472
        %v823 = vlog2.pop %v792
        %v824 = vmul.f32 %v823, 0.6931472
        %v825 = vadd.f32 %v633, %v794
        %v826 = vadd.f32 %v634, %v796
        %v827 = vadd.f32 %v635, %v798
        %v828 = vadd.f32 %v636, %v800
        %v829 = vadd.f32 %v637, %v802
        %v830 = vadd.f32 %v638, %v804
        %v831 = vadd.f32 %v639, %v806
        %v832 = vadd.f32 %v640, %v808
        %v833 = vadd.f32 %v641, %v810
        %v834 = vadd.f32 %v642, %v812
        %v835 = vadd.f32 %v643, %v814
        %v836 = vadd.f32 %v644, %v816
        %v837 = vadd.f32 %v645, %v818
        %v838 = vadd.f32 %v646, %v820
        %v839 = vadd.f32 %v647, %v822
        %v840 = vadd.f32 %v648, %v824
        %vm841 = vcmask 7168
        %842 = vst.msk [vmem:[%s368] sm:$0xff] %vm841, %v825
        %843 = vst.msk [vmem:[%s368 + $0x8] sm:$0xff] %vm841, %v826
        %844 = vst.msk [vmem:[%s368 + $0x10] sm:$0xff] %vm841, %v827
        %845 = vst.msk [vmem:[%s368 + $0x18] sm:$0xff] %vm841, %v828
        %846 = vst.msk [vmem:[%s368 + $0x20] sm:$0xff] %vm841, %v829
        %847 = vst.msk [vmem:[%s368 + $0x28] sm:$0xff] %vm841, %v830
        %848 = vst.msk [vmem:[%s368 + $0x30] sm:$0xff] %vm841, %v831
        %849 = vst.msk [vmem:[%s368 + $0x38] sm:$0xff] %vm841, %v832
        %850 = vst.msk [vmem:[%s368 + $0x40] sm:$0xff] %vm841, %v833
        %851 = vst.msk [vmem:[%s368 + $0x48] sm:$0xff] %vm841, %v834
        %852 = vst.msk [vmem:[%s368 + $0x50] sm:$0xff] %vm841, %v835
        %853 = vst.msk [vmem:[%s368 + $0x58] sm:$0xff] %vm841, %v836
        %854 = vst.msk [vmem:[%s368 + $0x60] sm:$0xff] %vm841, %v837
        %855 = vst.msk [vmem:[%s368 + $0x68] sm:$0xff] %vm841, %v838
        %856 = vst.msk [vmem:[%s368 + $0x70] sm:$0xff] %vm841, %v839
        %857 = vst.msk [vmem:[%s368 + $0x78] sm:$0xff] %vm841, %v840
        %v858 = vrcp.pop %v777
        %v859 = vmul.f32 1.0, %v858
        %v860 = vrcp.pop %v778
        %v861 = vmul.f32 1.0, %v860
        %v862 = vrcp.pop %v779
        %v863 = vmul.f32 1.0, %v862
        %v864 = vrcp.pop %v780
        %v865 = vmul.f32 1.0, %v864
        %v866 = vrcp.pop %v781
        %v867 = vmul.f32 1.0, %v866
        %v868 = vrcp.pop %v782
        %v869 = vmul.f32 1.0, %v868
        %v870 = vrcp.pop %v783
        %v871 = vmul.f32 1.0, %v870
        %v872 = vrcp.pop %v784
        %v873 = vmul.f32 1.0, %v872
        %v874 = vrcp.pop %v785
        %v875 = vmul.f32 1.0, %v874
        %v876 = vrcp.pop %v786
        %v877 = vmul.f32 1.0, %v876
        %v878 = vrcp.pop %v787
        %v879 = vmul.f32 1.0, %v878
        %v880 = vrcp.pop %v788
        %v881 = vmul.f32 1.0, %v880
        %v882 = vrcp.pop %v789
        %v883 = vmul.f32 1.0, %v882
        %v884 = vrcp.pop %v790
        %v885 = vmul.f32 1.0, %v884
        %v886 = vrcp.pop %v791
        %v887 = vmul.f32 1.0, %v886
        %v888 = vrcp.pop %v792
        %v889 = vmul.f32 1.0, %v888
        %v890 = vmul.f32 %v666, %v859
        %v891 = vmul.f32 %v668, %v861
        %v892 = vmul.f32 %v670, %v863
        %v893 = vmul.f32 %v672, %v865
        %v894 = vmul.f32 %v674, %v867
        %v895 = vmul.f32 %v676, %v869
        %v896 = vmul.f32 %v678, %v871
        %v897 = vmul.f32 %v680, %v873
        %v898 = vmul.f32 %v682, %v875
        %v899 = vmul.f32 %v684, %v877
        %v900 = vmul.f32 %v686, %v879
        %v901 = vmul.f32 %v688, %v881
        %v902 = vmul.f32 %v690, %v883
        %v903 = vmul.f32 %v692, %v885
        %v904 = vmul.f32 %v694, %v887
        %v905 = vmul.f32 %v696, %v889
        %906 = vst [vmem:[%s340] sm:$0xff] %v890
        %907 = vst [vmem:[%s340 + $0x8] sm:$0xff] %v891
        %908 = vst [vmem:[%s340 + $0x10] sm:$0xff] %v892
        %909 = vst [vmem:[%s340 + $0x18] sm:$0xff] %v893
        %910 = vst [vmem:[%s340 + $0x20] sm:$0xff] %v894
        %911 = vst [vmem:[%s340 + $0x28] sm:$0xff] %v895
        %912 = vst [vmem:[%s340 + $0x30] sm:$0xff] %v896
        %913 = vst [vmem:[%s340 + $0x38] sm:$0xff] %v897
        %914 = vst [vmem:[%s340 + $0x40] sm:$0xff] %v898
        %915 = vst [vmem:[%s340 + $0x48] sm:$0xff] %v899
        %916 = vst [vmem:[%s340 + $0x50] sm:$0xff] %v900
        %917 = vst [vmem:[%s340 + $0x58] sm:$0xff] %v901
        %918 = vst [vmem:[%s340 + $0x60] sm:$0xff] %v902
        %919 = vst [vmem:[%s340 + $0x68] sm:$0xff] %v903
        %920 = vst [vmem:[%s340 + $0x70] sm:$0xff] %v904
        %921 = vst [vmem:[%s340 + $0x78] sm:$0xff] %v905
        %v922 = vlaneseq
        %v923 = vand.u32 %v922, 127
        %vm924 = vcmp.eq.f32.partialorder %v522, %v601
        %vm925 = vcmp.eq.f32.partialorder %v527, %v603
        %vm926 = vcmp.eq.f32.partialorder %v532, %v605
        %vm927 = vcmp.eq.f32.partialorder %v537, %v607
        %vm928 = vcmp.eq.f32.partialorder %v542, %v609
        %vm929 = vcmp.eq.f32.partialorder %v547, %v611
        %vm930 = vcmp.eq.f32.partialorder %v552, %v613
        %vm931 = vcmp.eq.f32.partialorder %v557, %v615
        %vm932 = vcmp.eq.f32.partialorder %v562, %v617
        %vm933 = vcmp.eq.f32.partialorder %v567, %v619
        %vm934 = vcmp.eq.f32.partialorder %v572, %v621
        %vm935 = vcmp.eq.f32.partialorder %v577, %v623
        %vm936 = vcmp.eq.f32.partialorder %v582, %v625
        %vm937 = vcmp.eq.f32.partialorder %v587, %v627
        %vm938 = vcmp.eq.f32.partialorder %v592, %v629
        %vm939 = vcmp.eq.f32.partialorder %v597, %v631
        %v940 = vsel %vm924, %v923, 128
        %v941 = vsel %vm925, %v923, 128
        %v942 = vsel %vm926, %v923, 128
        %v943 = vsel %vm927, %v923, 128
        %v944 = vsel %vm928, %v923, 128
        %v945 = vsel %vm929, %v923, 128
        %v946 = vsel %vm930, %v923, 128
        %v947 = vsel %vm931, %v923, 128
        %v948 = vsel %vm932, %v923, 128
        %v949 = vsel %vm933, %v923, 128
        %v950 = vsel %vm934, %v923, 128
        %v951 = vsel %vm935, %v923, 128
        %v952 = vsel %vm936, %v923, 128
        %v953 = vsel %vm937, %v923, 128
        %v954 = vsel %vm938, %v923, 128
        %v955 = vsel %vm939, %v923, 128
        %v956 = vand.u32 %v940, 65535
        %v957 = vshra.s32 %v940, 16
        %v958 = vcvt.s32.f32 %v956
        %v959 = vcvt.s32.f32 %v957
        %960 = vmin.xlane.f32.xlu0 %v959
        %v961 = vpop.xlane.xlu0 %960
        %vm962 = vcmp.eq.f32.partialorder %v959, %v961
        %v963 = vsel %vm962, %v958, inf
        %964 = vmin.xlane.f32.xlu0 %v963
        %v965 = vpop.xlane.xlu0 %964
        %v966 = vcvt.f32.s32 %v965
        %v967 = vcvt.f32.s32 %v961
        %v968 = vshll.u32 %v967, 16
        %v969 = vadd.s32 %v968, %v966
        %v970 = vand.u32 %v941, 65535
        %v971 = vshra.s32 %v941, 16
        %v972 = vcvt.s32.f32 %v970
        %v973 = vcvt.s32.f32 %v971
        %974 = vmin.xlane.f32.xlu0 %v973
        %v975 = vpop.xlane.xlu0 %974
        %vm976 = vcmp.eq.f32.partialorder %v973, %v975
        %v977 = vsel %vm976, %v972, inf
        %978 = vmin.xlane.f32.xlu0 %v977
        %v979 = vpop.xlane.xlu0 %978
        %v980 = vcvt.f32.s32 %v979
        %v981 = vcvt.f32.s32 %v975
        %v982 = vshll.u32 %v981, 16
        %v983 = vadd.s32 %v982, %v980
        %v984 = vand.u32 %v942, 65535
        %v985 = vshra.s32 %v942, 16
        %v986 = vcvt.s32.f32 %v984
        %v987 = vcvt.s32.f32 %v985
        %988 = vmin.xlane.f32.xlu0 %v987
        %v989 = vpop.xlane.xlu0 %988
        %vm990 = vcmp.eq.f32.partialorder %v987, %v989
        %v991 = vsel %vm990, %v986, inf
        %992 = vmin.xlane.f32.xlu0 %v991
        %v993 = vpop.xlane.xlu0 %992
        %v994 = vcvt.f32.s32 %v993
        %v995 = vcvt.f32.s32 %v989
        %v996 = vshll.u32 %v995, 16
        %v997 = vadd.s32 %v996, %v994
        %v998 = vand.u32 %v943, 65535
        %v999 = vshra.s32 %v943, 16
        %v1000 = vcvt.s32.f32 %v998
        %v1001 = vcvt.s32.f32 %v999
        %1002 = vmin.xlane.f32.xlu0 %v1001
        %v1003 = vpop.xlane.xlu0 %1002
        %vm1004 = vcmp.eq.f32.partialorder %v1001, %v1003
        %v1005 = vsel %vm1004, %v1000, inf
        %1006 = vmin.xlane.f32.xlu0 %v1005
        %v1007 = vpop.xlane.xlu0 %1006
        %v1008 = vcvt.f32.s32 %v1007
        %v1009 = vcvt.f32.s32 %v1003
        %v1010 = vshll.u32 %v1009, 16
        %v1011 = vadd.s32 %v1010, %v1008
        %v1012 = vand.u32 %v944, 65535
        %v1013 = vshra.s32 %v944, 16
        %v1014 = vcvt.s32.f32 %v1012
        %v1015 = vcvt.s32.f32 %v1013
        %1016 = vmin.xlane.f32.xlu0 %v1015
        %v1017 = vpop.xlane.xlu0 %1016
        %vm1018 = vcmp.eq.f32.partialorder %v1015, %v1017
        %v1019 = vsel %vm1018, %v1014, inf
        %1020 = vmin.xlane.f32.xlu0 %v1019
        %v1021 = vpop.xlane.xlu0 %1020
        %v1022 = vcvt.f32.s32 %v1021
        %v1023 = vcvt.f32.s32 %v1017
        %v1024 = vshll.u32 %v1023, 16
        %v1025 = vadd.s32 %v1024, %v1022
        %v1026 = vand.u32 %v945, 65535
        %v1027 = vshra.s32 %v945, 16
        %v1028 = vcvt.s32.f32 %v1026
        %v1029 = vcvt.s32.f32 %v1027
        %1030 = vmin.xlane.f32.xlu0 %v1029
        %v1031 = vpop.xlane.xlu0 %1030
        %vm1032 = vcmp.eq.f32.partialorder %v1029, %v1031
        %v1033 = vsel %vm1032, %v1028, inf
        %1034 = vmin.xlane.f32.xlu0 %v1033
        %v1035 = vpop.xlane.xlu0 %1034
        %v1036 = vcvt.f32.s32 %v1035
        %v1037 = vcvt.f32.s32 %v1031
        %v1038 = vshll.u32 %v1037, 16
        %v1039 = vadd.s32 %v1038, %v1036
        %v1040 = vand.u32 %v946, 65535
        %v1041 = vshra.s32 %v946, 16
        %v1042 = vcvt.s32.f32 %v1040
        %v1043 = vcvt.s32.f32 %v1041
        %1044 = vmin.xlane.f32.xlu0 %v1043
        %v1045 = vpop.xlane.xlu0 %1044
        %vm1046 = vcmp.eq.f32.partialorder %v1043, %v1045
        %v1047 = vsel %vm1046, %v1042, inf
        %1048 = vmin.xlane.f32.xlu0 %v1047
        %v1049 = vpop.xlane.xlu0 %1048
        %v1050 = vcvt.f32.s32 %v1049
        %v1051 = vcvt.f32.s32 %v1045
        %v1052 = vshll.u32 %v1051, 16
        %v1053 = vadd.s32 %v1052, %v1050
        %v1054 = vand.u32 %v947, 65535
        %v1055 = vshra.s32 %v947, 16
        %v1056 = vcvt.s32.f32 %v1054
        %v1057 = vcvt.s32.f32 %v1055
        %1058 = vmin.xlane.f32.xlu0 %v1057
        %v1059 = vpop.xlane.xlu0 %1058
        %vm1060 = vcmp.eq.f32.partialorder %v1057, %v1059
        %v1061 = vsel %vm1060, %v1056, inf
        %1062 = vmin.xlane.f32.xlu0 %v1061
        %v1063 = vpop.xlane.xlu0 %1062
        %v1064 = vcvt.f32.s32 %v1063
        %v1065 = vcvt.f32.s32 %v1059
        %v1066 = vshll.u32 %v1065, 16
        %v1067 = vadd.s32 %v1066, %v1064
        %v1068 = vand.u32 %v948, 65535
        %v1069 = vshra.s32 %v948, 16
        %v1070 = vcvt.s32.f32 %v1068
        %v1071 = vcvt.s32.f32 %v1069
        %1072 = vmin.xlane.f32.xlu0 %v1071
        %v1073 = vpop.xlane.xlu0 %1072
        %vm1074 = vcmp.eq.f32.partialorder %v1071, %v1073
        %v1075 = vsel %vm1074, %v1070, inf
        %1076 = vmin.xlane.f32.xlu0 %v1075
        %v1077 = vpop.xlane.xlu0 %1076
        %v1078 = vcvt.f32.s32 %v1077
        %v1079 = vcvt.f32.s32 %v1073
        %v1080 = vshll.u32 %v1079, 16
        %v1081 = vadd.s32 %v1080, %v1078
        %v1082 = vand.u32 %v949, 65535
        %v1083 = vshra.s32 %v949, 16
        %v1084 = vcvt.s32.f32 %v1082
        %v1085 = vcvt.s32.f32 %v1083
        %1086 = vmin.xlane.f32.xlu0 %v1085
        %v1087 = vpop.xlane.xlu0 %1086
        %vm1088 = vcmp.eq.f32.partialorder %v1085, %v1087
        %v1089 = vsel %vm1088, %v1084, inf
        %1090 = vmin.xlane.f32.xlu0 %v1089
        %v1091 = vpop.xlane.xlu0 %1090
        %v1092 = vcvt.f32.s32 %v1091
        %v1093 = vcvt.f32.s32 %v1087
        %v1094 = vshll.u32 %v1093, 16
        %v1095 = vadd.s32 %v1094, %v1092
        %v1096 = vand.u32 %v950, 65535
        %v1097 = vshra.s32 %v950, 16
        %v1098 = vcvt.s32.f32 %v1096
        %v1099 = vcvt.s32.f32 %v1097
        %1100 = vmin.xlane.f32.xlu0 %v1099
        %v1101 = vpop.xlane.xlu0 %1100
        %vm1102 = vcmp.eq.f32.partialorder %v1099, %v1101
        %v1103 = vsel %vm1102, %v1098, inf
        %1104 = vmin.xlane.f32.xlu0 %v1103
        %v1105 = vpop.xlane.xlu0 %1104
        %v1106 = vcvt.f32.s32 %v1105
        %v1107 = vcvt.f32.s32 %v1101
        %v1108 = vshll.u32 %v1107, 16
        %v1109 = vadd.s32 %v1108, %v1106
        %v1110 = vand.u32 %v951, 65535
        %v1111 = vshra.s32 %v951, 16
        %v1112 = vcvt.s32.f32 %v1110
        %v1113 = vcvt.s32.f32 %v1111
        %1114 = vmin.xlane.f32.xlu0 %v1113
        %v1115 = vpop.xlane.xlu0 %1114
        %vm1116 = vcmp.eq.f32.partialorder %v1113, %v1115
        %v1117 = vsel %vm1116, %v1112, inf
        %1118 = vmin.xlane.f32.xlu0 %v1117
        %v1119 = vpop.xlane.xlu0 %1118
        %v1120 = vcvt.f32.s32 %v1119
        %v1121 = vcvt.f32.s32 %v1115
        %v1122 = vshll.u32 %v1121, 16
        %v1123 = vadd.s32 %v1122, %v1120
        %v1124 = vand.u32 %v952, 65535
        %v1125 = vshra.s32 %v952, 16
        %v1126 = vcvt.s32.f32 %v1124
        %v1127 = vcvt.s32.f32 %v1125
        %1128 = vmin.xlane.f32.xlu0 %v1127
        %v1129 = vpop.xlane.xlu0 %1128
        %vm1130 = vcmp.eq.f32.partialorder %v1127, %v1129
        %v1131 = vsel %vm1130, %v1126, inf
        %1132 = vmin.xlane.f32.xlu0 %v1131
        %v1133 = vpop.xlane.xlu0 %1132
        %v1134 = vcvt.f32.s32 %v1133
        %v1135 = vcvt.f32.s32 %v1129
        %v1136 = vshll.u32 %v1135, 16
        %v1137 = vadd.s32 %v1136, %v1134
        %v1138 = vand.u32 %v953, 65535
        %v1139 = vshra.s32 %v953, 16
        %v1140 = vcvt.s32.f32 %v1138
        %v1141 = vcvt.s32.f32 %v1139
        %1142 = vmin.xlane.f32.xlu0 %v1141
        %v1143 = vpop.xlane.xlu0 %1142
        %vm1144 = vcmp.eq.f32.partialorder %v1141, %v1143
        %v1145 = vsel %vm1144, %v1140, inf
        %1146 = vmin.xlane.f32.xlu0 %v1145
        %v1147 = vpop.xlane.xlu0 %1146
        %v1148 = vcvt.f32.s32 %v1147
        %v1149 = vcvt.f32.s32 %v1143
        %v1150 = vshll.u32 %v1149, 16
        %v1151 = vadd.s32 %v1150, %v1148
        %v1152 = vand.u32 %v954, 65535
        %v1153 = vshra.s32 %v954, 16
        %v1154 = vcvt.s32.f32 %v1152
        %v1155 = vcvt.s32.f32 %v1153
        %1156 = vmin.xlane.f32.xlu0 %v1155
        %v1157 = vpop.xlane.xlu0 %1156
        %vm1158 = vcmp.eq.f32.partialorder %v1155, %v1157
        %v1159 = vsel %vm1158, %v1154, inf
        %1160 = vmin.xlane.f32.xlu0 %v1159
        %v1161 = vpop.xlane.xlu0 %1160
        %v1162 = vcvt.f32.s32 %v1161
        %v1163 = vcvt.f32.s32 %v1157
        %v1164 = vshll.u32 %v1163, 16
        %v1165 = vadd.s32 %v1164, %v1162
        %v1166 = vand.u32 %v955, 65535
        %v1167 = vshra.s32 %v955, 16
        %v1168 = vcvt.s32.f32 %v1166
        %v1169 = vcvt.s32.f32 %v1167
        %1170 = vmin.xlane.f32.xlu0 %v1169
        %v1171 = vpop.xlane.xlu0 %1170
        %vm1172 = vcmp.eq.f32.partialorder %v1169, %v1171
        %v1173 = vsel %vm1172, %v1168, inf
        %1174 = vmin.xlane.f32.xlu0 %v1173
        %v1175 = vpop.xlane.xlu0 %1174
        %v1176 = vcvt.f32.s32 %v1175
        %v1177 = vcvt.f32.s32 %v1171
        %v1178 = vshll.u32 %v1177, 16
        %v1179 = vadd.s32 %v1178, %v1176
        %vm1180 = vcmp.eq.s32.totalorder %v923, %v969
        %vm1181 = vcmp.eq.s32.totalorder %v923, %v983
        %vm1182 = vcmp.eq.s32.totalorder %v923, %v997
        %vm1183 = vcmp.eq.s32.totalorder %v923, %v1011
        %vm1184 = vcmp.eq.s32.totalorder %v923, %v1025
        %vm1185 = vcmp.eq.s32.totalorder %v923, %v1039
        %vm1186 = vcmp.eq.s32.totalorder %v923, %v1053
        %vm1187 = vcmp.eq.s32.totalorder %v923, %v1067
        %vm1188 = vcmp.eq.s32.totalorder %v923, %v1081
        %vm1189 = vcmp.eq.s32.totalorder %v923, %v1095
        %vm1190 = vcmp.eq.s32.totalorder %v923, %v1109
        %vm1191 = vcmp.eq.s32.totalorder %v923, %v1123
        %vm1192 = vcmp.eq.s32.totalorder %v923, %v1137
        %vm1193 = vcmp.eq.s32.totalorder %v923, %v1151
        %vm1194 = vcmp.eq.s32.totalorder %v923, %v1165
        %vm1195 = vcmp.eq.s32.totalorder %v923, %v1179
        %v1196 = vsel %vm1180, 1, 0
        %v1197 = vsel %vm1181, 1, 0
        %v1198 = vsel %vm1182, 1, 0
        %v1199 = vsel %vm1183, 1, 0
        %v1200 = vsel %vm1184, 1, 0
        %v1201 = vsel %vm1185, 1, 0
        %v1202 = vsel %vm1186, 1, 0
        %v1203 = vsel %vm1187, 1, 0
        %v1204 = vsel %vm1188, 1, 0
        %v1205 = vsel %vm1189, 1, 0
        %v1206 = vsel %vm1190, 1, 0
        %v1207 = vsel %vm1191, 1, 0
        %v1208 = vsel %vm1192, 1, 0
        %v1209 = vsel %vm1193, 1, 0
        %v1210 = vsel %vm1194, 1, 0
        %v1211 = vsel %vm1195, 1, 0
        %v1212 = vcvt.s32.f32 %v1196
        %v1213 = vcvt.s32.f32 %v1197
        %v1214 = vcvt.s32.f32 %v1198
        %v1215 = vcvt.s32.f32 %v1199
        %v1216 = vcvt.s32.f32 %v1200
        %v1217 = vcvt.s32.f32 %v1201
        %v1218 = vcvt.s32.f32 %v1202
        %v1219 = vcvt.s32.f32 %v1203
        %v1220 = vcvt.s32.f32 %v1204
        %v1221 = vcvt.s32.f32 %v1205
        %v1222 = vcvt.s32.f32 %v1206
        %v1223 = vcvt.s32.f32 %v1207
        %v1224 = vcvt.s32.f32 %v1208
        %v1225 = vcvt.s32.f32 %v1209
        %v1226 = vcvt.s32.f32 %v1210
        %v1227 = vcvt.s32.f32 %v1211
        %1228 = vmatprep.subr.mxu0 0.0
        %1229 = vmatpush1.xpose.msra.mxu0 %v1212
        %1230 = vmatprep.subr.mxu0 0.0
        %1231 = vmatpush1.xpose.msra.mxu0 %v1213
        %1232 = vmatprep.subr.mxu0 0.0
        %1233 = vmatpush1.xpose.msra.mxu0 %v1214
        %1234 = vmatprep.subr.mxu0 0.0
        %1235 = vmatpush1.xpose.msra.mxu0 %v1215
        %1236 = vmatprep.subr.mxu0 0.0
        %1237 = vmatpush1.xpose.msra.mxu0 %v1216
        %1238 = vmatprep.subr.mxu0 0.0
        %1239 = vmatpush1.xpose.msra.mxu0 %v1217
        %1240 = vmatprep.subr.mxu0 0.0
        %1241 = vmatpush1.xpose.msra.mxu0 %v1218
        %1242 = vmatprep.subr.mxu0 0.0
        %1243 = vmatpush1.xpose.msra.mxu0 %v1219
        %1244 = vmatprep.subr.mxu0 0.0
        %1245 = vmatpush1.xpose.msra.mxu0 %v1220
        %1246 = vmatprep.subr.mxu0 0.0
        %1247 = vmatpush1.xpose.msra.mxu0 %v1221
        %1248 = vmatprep.subr.mxu0 0.0
        %1249 = vmatpush1.xpose.msra.mxu0 %v1222
        %1250 = vmatprep.subr.mxu0 0.0
        %1251 = vmatpush1.xpose.msra.mxu0 %v1223
        %1252 = vmatprep.subr.mxu0 0.0
        %1253 = vmatpush1.xpose.msra.mxu0 %v1224
        %1254 = vmatprep.subr.mxu0 0.0
        %1255 = vmatpush1.xpose.msra.mxu0 %v1225
        %1256 = vmatprep.subr.mxu0 0.0
        %1257 = vmatpush1.xpose.msra.mxu0 %v1226
        %1258 = vmatprep.subr.mxu0 0.0
        %1259 = vmatpush1.xpose.msra.mxu0 %v1227
        %1260 = vmatprep.subr.mxu0 0.0
        %1261 = vmatpush1.xpose.msra.mxu0 0.0
        %1262 = vmatprep.subr.mxu0 0.0
        %1263 = vmatpush1.xpose.msra.mxu0 0.0
        %1264 = vmatprep.subr.mxu0 0.0
        %1265 = vmatpush1.xpose.msra.mxu0 0.0
        %1266 = vmatprep.subr.mxu0 0.0
        %1267 = vmatpush1.xpose.msra.mxu0 0.0
        %1268 = vmatprep.subr.mxu0 0.0
        %1269 = vmatpush1.xpose.msra.mxu0 0.0
        %1270 = vmatprep.subr.mxu0 0.0
        %1271 = vmatpush1.xpose.msra.mxu0 0.0
        %1272 = vmatprep.subr.mxu0 0.0
        %1273 = vmatpush1.xpose.msra.mxu0 0.0
        %1274 = vmatprep.subr.mxu0 0.0
        %1275 = vmatpush1.xpose.msra.mxu0 0.0
        %1276 = vmatprep.subr.mxu0 0.0
        %1277 = vmatpush1.xpose.msra.mxu0 0.0
        %1278 = vmatprep.subr.mxu0 0.0
        %1279 = vmatpush1.xpose.msra.mxu0 0.0
        %1280 = vmatprep.subr.mxu0 0.0
        %1281 = vmatpush1.xpose.msra.mxu0 0.0
        %1282 = vmatprep.subr.mxu0 0.0
        %1283 = vmatpush1.xpose.msra.mxu0 0.0
        %1284 = vmatprep.subr.mxu0 0.0
        %1285 = vmatpush1.xpose.msra.mxu0 0.0
        %1286 = vmatprep.subr.mxu0 0.0
        %1287 = vmatpush1.xpose.msra.mxu0 0.0
        %1288 = vmatprep.subr.mxu0 0.0
        %1289 = vmatpush1.xpose.msra.mxu0 0.0
        %1290 = vmatprep.subr.mxu0 0.0
        %1291 = vmatpush1.xpose.msra.mxu0 0.0
        %1292 = vmatprep.mubr.f32.mxu0 0.0
        %1293 = vmatmul.mubr.f32.gmra.mrb[0].mxu0 %v373
        %v1294 = vpop.f32.mrb[0].mxu0
        %v1295 = vadd.f32 0.0, %v1294
        %v1296 = vpop.f32.mrb[0].mxu0
        %1297 = vdwg.mxu0
        %1298 = vst [vmem:[%s347] sm:$0xff] %v1295
        %s1299 = sand.u32 %s136, 1
        %s1300 = scalar_lea.sflag [#allocation6], %s1299
        %s1301 = sand.u32 %s136, 1
        %s1302 = smul.addr %s1301, 128
        %s1303 = scalar_lea.vmem [#allocation10], %s1302
        %s1304 = sand.u32 %s164, 1
        %s1305 = scalar_lea.sflag [#allocation12], %s1304
        %s1306 = sand.u32 %s164, 1
        %s1307 = smul.addr %s1306, 8
        %s1308 = scalar_lea.vmem [#allocation11], %s1307
        %s1309 = smul.u32 16, %s39
        %p1310 = scmp.lt.s32.totalorder %s38, 1
        %s1311 = scalar_select %p1310, %s38, 1
        %p1312 = scmp.lt.s32.totalorder %s1309, 15
        %s1313 = scalar_select %p1312, %s1309, 15
        %s1314 = smul.addr %s1311, 16
        %s1315 = sadd.s32 %s1313, %s1314
        %s1316 = smul.addr %s1315, 8
        %s1317 = scalar_lea.vmem %s6, %s1316
        // Predicated region
        $region45: #{tpu_custom_call.1} parent=31 // pred_check
          %p1318 = pneg %p146
        $region46: #{tpu_custom_call.1} parent=31 // pred_check_branch
          %1320 = sbr.rel (%p1318) target = $region48
        $region47: #{tpu_custom_call.1} parent=31 // pred_region
          %s1321 = smul.u32 16, %s39
          %s1323 = ssub.s32 2048, 2048
          %1324 = vsyncadd %s1300, %s1323
          %s1325 = smul.addr %s38, 16
          %s1326 = sadd.s32 %s1321, %s1325
          %s1327 = smul.addr %s1326, 128
          %s1328 = scalar_lea.hbm %s4, %s1327
          %s1329 = sshll.u32 %s1303, 4
          %s1330 = int_to_ptr.vmem [resolvable:$true] %s1329
          %1335 = dma.vmem_to_hbm [thread:$0]  %s1330, 2048, %s1328, %s1300, 128, 128, 8
        $region48: #{tpu_custom_call.1} parent=31 // pred_fallthru
          _
        // Predicated region
        $region49: #{tpu_custom_call.1} parent=31 // pred_check
          %p1336 = pneg %p174
        $region50: #{tpu_custom_call.1} parent=31 // pred_check_branch
          %1338 = sbr.rel (%p1336) target = $region52
        $region51: #{tpu_custom_call.1} parent=31 // pred_region
          %s1340 = ssub.s32 128, 128
          %1341 = vsyncadd %s1305, %s1340
          %s1342 = sadd.s32 %s39, %s38
          %s1343 = smul.addr %s1342, 128
          %s1344 = scalar_lea.hbm %s5, %s1343
          %s1346 = sshll.u32 %s1308, 4
          %s1347 = int_to_ptr.vmem [resolvable:$true] %s1346
          %1349 = dma.vmem_to_hbm [thread:$0]  %s1347, 128, %s1344, %s1305
        $region52: #{tpu_custom_call.1} parent=31 // pred_fallthru
          _
        // Predicated region
        $region53: #{tpu_custom_call.1} parent=31 // pred_check
          %p1350 = pneg %p202
        $region54: #{tpu_custom_call.1} parent=31 // pred_check_branch
          %1352 = sbr.rel (%p1350) target = $region56
        $region55: #{tpu_custom_call.1} parent=31 // pred_region
          %s1353 = smul.u32 16, %s39
        $region56: #{tpu_custom_call.1} parent=31 // pred_fallthru
          _
      $region32: #{tpu_custom_call.1} parent=5 // pred_fallthru
        _
      %p1354 = scmp.le.s32.totalorder 2, %s29
      // Predicated region
      $region57: #{tpu_custom_call.1} parent=5 // pred_check
        %p1355 = pneg %p1354
      $region58: #{tpu_custom_call.1} parent=5 // pred_check_branch
        %1357 = sbr.rel (%p1355) target = $region60
      $region59: #{tpu_custom_call.1} parent=5 // pred_region
        %s1358 = ssub.s32 %s29, 2
        // Predicated region
        $region61: #{tpu_custom_call.1} parent=59 // pred_check
          %p1359 = pneg %p152
        $region62: #{tpu_custom_call.1} parent=59 // pred_check_branch
          %1361 = sbr.rel (%p1359) target = $region64
        $region63: #{tpu_custom_call.1} parent=59 // pred_region
          %s1362 = sand.u32 %s137, 1
          %s1363 = scalar_lea.sflag [#allocation6], %s1362
          %s1364 = sand.u32 %s137, 1
          %s1365 = smul.addr %s1364, 128
          %s1366 = scalar_lea.vmem [#allocation10], %s1365
          %1367 = dma.done %s1363, 2048
        $region64: #{tpu_custom_call.1} parent=59 // pred_fallthru
          _
        // Predicated region
        $region65: #{tpu_custom_call.1} parent=59 // pred_check
          %p1368 = pneg %p180
        $region66: #{tpu_custom_call.1} parent=59 // pred_check_branch
          %1370 = sbr.rel (%p1368) target = $region68
        $region67: #{tpu_custom_call.1} parent=59 // pred_region
          %s1371 = sand.u32 %s165, 1
          %s1372 = scalar_lea.sflag [#allocation12], %s1371
          %s1373 = sand.u32 %s165, 1
          %s1374 = smul.addr %s1373, 8
          %s1375 = scalar_lea.vmem [#allocation11], %s1374
          %1376 = dma.done %s1372, 128
        $region68: #{tpu_custom_call.1} parent=59 // pred_fallthru
          _
        // Predicated region
        $region69: #{tpu_custom_call.1} parent=59 // pred_check
          %p1377 = pneg %p208
        $region70: #{tpu_custom_call.1} parent=59 // pred_check_branch
          %1379 = sbr.rel (%p1377) target = $region72
        $region71: #{tpu_custom_call.1} parent=59 // pred_region
          %s1380 = smul.u32 16, %s41
          %p1381 = scmp.lt.s32.totalorder %s40, 1
          %s1382 = scalar_select %p1381, %s40, 1
          %p1383 = scmp.lt.s32.totalorder %s1380, 15
          %s1384 = scalar_select %p1383, %s1380, 15
          %s1385 = smul.addr %s1382, 16
          %s1386 = sadd.s32 %s1384, %s1385
          %s1387 = smul.addr %s1386, 8
          %s1388 = scalar_lea.vmem %s6, %s1387
        $region72: #{tpu_custom_call.1} parent=59 // pred_fallthru
          _
      $region60: #{tpu_custom_call.1} parent=5 // pred_fallthru
        _
    $region6: #{tpu_custom_call.1} parent=1 // loop_footer
      %s33 = sadd.s32 1, %s29
    $region7: #{tpu_custom_call.1} parent=1 // loop_footer_branch
      %28 = sbr.rel target = $region3
    $region8: #{tpu_custom_call.1} parent=1 // loop_exit
      _
    %1389 = vsyncpa [#allocation5], 1
    %s1390 = scalar_lea.sflag [#allocation5], 1
    %1391 = vsyncpa %s1390, 1
    %1392 = vsyncpa [#allocation8], 1
    %s1393 = scalar_lea.sflag [#allocation8], 1
    %1394 = vsyncpa %s1393, 1
    %1395 = vsyncpa [#allocation6], 1
    %s1396 = scalar_lea.sflag [#allocation6], 1
    %1397 = vsyncpa %s1396, 1
    %1398 = vsyncpa [#allocation12], 1
    %s1399 = scalar_lea.sflag [#allocation12], 1
    %1400 = vsyncpa %s1399, 1

</llo_original>
